<compile_context>
chip_gen: v7x
topology: tpu7x:2x2x1
jax: 0.10.0
libtpu: 0.0.40
codegen_flags: <defaults>
</compile_context>

<pallas_src>
import functools

import jax
import jax.numpy as jnp
from jax.experimental import pallas as pl
from jax.experimental.pallas import tpu as pltpu

EPS = 1e-5


def _im2col_patches(xp, H, W, Cin):
    """xp: (H+2, W+2, Cin) zero-padded image -> (H*W, 9*Cin) patch matrix.

    Tap order is (kh, kw) row-major, channels minor -- must match the weight
    reshape in the wrapper.
    """
    taps = []
    for kh in range(3):
        for kw in range(3):
            taps.append(xp[kh:kh + H, kw:kw + W, :].reshape(H * W, Cin))
    return jnp.concatenate(taps, axis=1)


def _fused_kernel(xp_ref, w_ref, gamma_ref, beta_ref, out_ref,
                  ssum, ssq, sc, sh, *, inv_count):
    """Fused conv + training-mode BN + ReLU over a (phase, image) grid.

    phase 0: accumulate per-channel sum / sum-of-squares of the conv output
             into persistent VMEM scratch (no output writeback advances).
    phase 1: derive BN scale/shift once (first image), recompute conv and
             write ReLU(conv*scale + shift) channel-major (lane-dense).
    """
    p = pl.program_id(0)   # phase: 0 = stats, 1 = apply
    n = pl.program_id(1)   # image index

    _, Hp, Wp, Cin = xp_ref.shape
    H, W = Hp - 2, Wp - 2

    patches = _im2col_patches(xp_ref[0], H, W, Cin)            # (H*W, 9*Cin)
    y = jnp.dot(patches, w_ref[...],
                preferred_element_type=jnp.float32)            # (H*W, Cout)

    @pl.when((p == 0) & (n == 0))
    def _():
        ssum[...] = jnp.zeros_like(ssum)
        ssq[...] = jnp.zeros_like(ssq)

    @pl.when(p == 0)
    def _():
        ssum[...] += jnp.sum(y, axis=0, keepdims=True)
        ssq[...] += jnp.sum(y * y, axis=0, keepdims=True)

    @pl.when((p == 1) & (n == 0))
    def _():
        m = ssum[...] * inv_count
        # biased variance; clamp guards fp cancellation in E[y^2] - mean^2
        var = jnp.maximum(ssq[...] * inv_count - m * m, 0.0)
        s = gamma_ref[...] * jax.lax.rsqrt(var + EPS)
        sc[...] = s
        sh[...] = beta_ref[...] - m * s

    @pl.when(p == 1)
    def _():
        z = jnp.maximum(y * sc[...] + sh[...], 0.0)            # (H*W, Cout)
        # channel-major, lane-dense (Cout, H*W) store; already NCHW order
        out_ref[0] = jnp.transpose(z).astype(out_ref.dtype)


@jax.jit
def skeleton_block_forward(x_nchw, w3, w31, w13, wavg, bavg, gamma, beta):
    """x_nchw: (N, Cin, H, W); weights in PyTorch OIHW layout; returns NCHW."""
    N, Cin, H, W = x_nchw.shape
    Cout = w3.shape[0]
    HW = H * W
    Hp, Wp = H + 2, W + 2

    # ---- fold the 4 convolutions (+ identity residual) into ONE 3x3 conv ----
    wc = (w3 + wavg).astype(jnp.float32)
    wc = wc.at[:, :, :, 1].add(w31[:, :, :, 0].astype(jnp.float32))   # (3,1) -> col kw=1
    wc = wc.at[:, :, 1, :].add(w13[:, :, 0, :].astype(jnp.float32))   # (1,3) -> row kh=1
    if Cout == Cin:
        wc = wc.at[:, :, 1, 1].add(jnp.eye(Cout, dtype=jnp.float32))  # residual x
    # matmul form: rows ordered (kh, kw, cin) to match _im2col_patches
    w_mat = jnp.transpose(wc, (2, 3, 1, 0)).reshape(9 * Cin, Cout)

    # The avg-conv bias is a per-channel constant added before training-mode
    # BatchNorm, so it cancels exactly in (y - mean(y)); it is not needed.
    del bavg

    # NHWC + 1-pixel zero pad (one small glue pass over the Cin-sized input;
    # both grid phases reuse this padded tensor).
    xp = jnp.pad(jnp.transpose(x_nchw, (0, 2, 3, 1)).astype(jnp.float32),
                 ((0, 0), (1, 1), (1, 1), (0, 0)))                    # (N, Hp, Wp, Cin)

    kernel = functools.partial(_fused_kernel, inv_count=1.0 / float(N * H * W))

    out = pl.pallas_call(
        kernel,
        out_shape=jax.ShapeDtypeStruct((N, Cout, HW), jnp.float32),
        grid_spec=pltpu.PrefetchScalarGridSpec(
            num_scalar_prefetch=0,
            grid=(2, N),                                   # (phase, image)
            in_specs=[
                pl.BlockSpec((1, Hp, Wp, Cin), lambda p, n: (n, 0, 0, 0)),
                pl.BlockSpec((9 * Cin, Cout), lambda p, n: (0, 0)),
                pl.BlockSpec((1, Cout), lambda p, n: (0, 0)),
                pl.BlockSpec((1, Cout), lambda p, n: (0, 0)),
            ],
            # phase 0 pins the output block index at 0 -> writeback is
            # deferred until phase 1 has written real data; exactly one HBM
            # write per output block.
            out_specs=pl.BlockSpec((1, Cout, HW), lambda p, n: (n * p, 0, 0)),
            scratch_shapes=[pltpu.VMEM((1, Cout), jnp.float32)] * 4,
        ),
        compiler_params=pltpu.CompilerParams(
            # stats accumulation + phase ordering require sequential execution
            dimension_semantics=("arbitrary", "arbitrary"),
            vmem_limit_bytes=32 * 1024 * 1024,
        ),
    )(xp, w_mat,
      gamma.reshape(1, Cout).astype(jnp.float32),
      beta.reshape(1, Cout).astype(jnp.float32))

    # already channel-major -> free reshape to NCHW, no transpose pass
    return out.reshape(N, Cout, H, W)


def _reference(x, w3, w31, w13, wavg, bavg, gamma, beta):
    dn = ('NCHW', 'OIHW', 'NCHW')
    conv = lambda x_, w_, pad: jax.lax.conv_general_dilated(
        x_, w_, (1, 1), pad, dimension_numbers=dn)
    square = conv(x, w3, ((1, 1), (1, 1)))
    ver = conv(x, w31, ((1, 1), (0, 0)))
    hor = conv(x, w13, ((0, 0), (1, 1)))
    avg = conv(x, wavg, ((1, 1), (1, 1))) + bavg.reshape(1, -1, 1, 1)
    y = square + ver + hor + avg
    if w3.shape[0] == x.shape[1]:
        y = y + x
    mean = jnp.mean(y, axis=(0, 2, 3), keepdims=True)
    var = jnp.var(y, axis=(0, 2, 3), keepdims=True)
    out = (y - mean) / jnp.sqrt(var + EPS)
    out = out * gamma.reshape(1, -1, 1, 1) + beta.reshape(1, -1, 1, 1)
    return jnp.maximum(out, 0.0)


if __name__ == "__main__":
    def run_case(case_idx, Cin, Cout):
        N, H, W = 2, 16, 16
        key = jax.random.fold_in(jax.random.PRNGKey(0), case_idx)
        k = jax.random.split(key, 8)
        x = jax.random.normal(k[0], (N, Cin, H, W), jnp.float32)
        s9 = (Cin * 9) ** -0.5
        s3 = (Cin * 3) ** -0.5
        w3 = jax.random.normal(k[1], (Cout, Cin, 3, 3), jnp.float32) * s9
        w31 = jax.random.normal(k[2], (Cout, Cin, 3, 1), jnp.float32) * s3
        w13 = jax.random.normal(k[3], (Cout, Cin, 1, 3), jnp.float32) * s3
        wavg = jax.random.normal(k[4], (Cout, Cin, 3, 3), jnp.float32) * s9
        bavg = jax.random.normal(k[5], (Cout,), jnp.float32) * 0.1
        gamma = 1.0 + 0.1 * jax.random.normal(k[6], (Cout,), jnp.float32)
        beta = 0.05 * jax.random.normal(k[7], (Cout,), jnp.float32)

        out = skeleton_block_forward(x, w3, w31, w13, wavg, bavg, gamma, beta)
        out = jax.block_until_ready(out)
        ref = _reference(x, w3, w31, w13, wavg, bavg, gamma, beta)
        assert out.shape == ref.shape, (out.shape, ref.shape)
        err = float(jnp.max(jnp.abs(out - ref)))
        assert jnp.allclose(out, ref, atol=1e-3, rtol=1e-3), \
            f"case {case_idx}: max abs err {err}"

    run_case(0, Cin=4, Cout=8)   # no residual (in != out)
    run_case(1, Cin=8, Cout=8)   # residual branch (in == out)
    print("KERNEL_OK")
</pallas_src>

<mosaic_0001>
module attributes {stable_mosaic.version = 11 : i64} {
  func.func @_fused_kernel(%arg0: i32, %arg1: i32, %arg2: memref<1x18x18x4xf32, #tpu.memory_space<vmem>>, %arg3: memref<36x8xf32, #tpu.memory_space<vmem>>, %arg4: memref<1x8xf32, #tpu.memory_space<vmem>>, %arg5: memref<1x8xf32, #tpu.memory_space<vmem>>, %arg6: memref<1x8x256xf32, #tpu.memory_space<vmem>>, %arg7: memref<1x8xf32, #tpu.memory_space<vmem>>, %arg8: memref<1x8xf32, #tpu.memory_space<vmem>>, %arg9: memref<1x8xf32, #tpu.memory_space<vmem>>, %arg10: memref<1x8xf32, #tpu.memory_space<vmem>>) attributes {dimension_semantics = [#tpu.dimension_semantics<arbitrary>, #tpu.dimension_semantics<arbitrary>], iteration_bounds = array<i64: 2, 2>, scalar_prefetch = 0 : i64, scratch_operands = 4 : i64, tpu.core_type = #tpu.core_type<tc>, window_params = [{transform_indices = @transform_0, window_bounds = array<i64: 1, 18, 18, 4>}, {pipeline_mode = #tpu.pipeline_mode<synchronous>, transform_indices = @transform_1, window_bounds = array<i64: 36, 8>}, {pipeline_mode = #tpu.pipeline_mode<synchronous>, transform_indices = @transform_2, window_bounds = array<i64: 1, 8>}, {pipeline_mode = #tpu.pipeline_mode<synchronous>, transform_indices = @transform_3, window_bounds = array<i64: 1, 8>}, {transform_indices = @transform_4, window_bounds = array<i64: 1, 8, 256>}]} {
    %c0 = arith.constant 0 : index
    %c0_0 = arith.constant 0 : index
    %c0_1 = arith.constant 0 : index
    %c0_2 = arith.constant 0 : index
    %0 = vector.load %arg2[%c0, %c0_0, %c0_1, %c0_2] : memref<1x18x18x4xf32, #tpu.memory_space<vmem>>, vector<1x18x18x4xf32>
    %1 = vector.shape_cast %0 : vector<1x18x18x4xf32> to vector<18x18x4xf32>
    %2 = vector.extract_strided_slice %1 {offsets = [0, 0, 0], sizes = [16, 16, 4], strides = [1, 1, 1]} : vector<18x18x4xf32> to vector<16x16x4xf32>
    %3 = vector.shape_cast %2 : vector<16x16x4xf32> to vector<256x4xf32>
    %4 = vector.extract_strided_slice %1 {offsets = [0, 1, 0], sizes = [16, 16, 4], strides = [1, 1, 1]} : vector<18x18x4xf32> to vector<16x16x4xf32>
    %5 = vector.shape_cast %4 : vector<16x16x4xf32> to vector<256x4xf32>
    %6 = vector.extract_strided_slice %1 {offsets = [0, 2, 0], sizes = [16, 16, 4], strides = [1, 1, 1]} : vector<18x18x4xf32> to vector<16x16x4xf32>
    %7 = vector.shape_cast %6 : vector<16x16x4xf32> to vector<256x4xf32>
    %8 = vector.extract_strided_slice %1 {offsets = [1, 0, 0], sizes = [16, 16, 4], strides = [1, 1, 1]} : vector<18x18x4xf32> to vector<16x16x4xf32>
    %9 = vector.shape_cast %8 : vector<16x16x4xf32> to vector<256x4xf32>
    %10 = vector.extract_strided_slice %1 {offsets = [1, 1, 0], sizes = [16, 16, 4], strides = [1, 1, 1]} : vector<18x18x4xf32> to vector<16x16x4xf32>
    %11 = vector.shape_cast %10 : vector<16x16x4xf32> to vector<256x4xf32>
    %12 = vector.extract_strided_slice %1 {offsets = [1, 2, 0], sizes = [16, 16, 4], strides = [1, 1, 1]} : vector<18x18x4xf32> to vector<16x16x4xf32>
    %13 = vector.shape_cast %12 : vector<16x16x4xf32> to vector<256x4xf32>
    %14 = vector.extract_strided_slice %1 {offsets = [2, 0, 0], sizes = [16, 16, 4], strides = [1, 1, 1]} : vector<18x18x4xf32> to vector<16x16x4xf32>
    %15 = vector.shape_cast %14 : vector<16x16x4xf32> to vector<256x4xf32>
    %16 = vector.extract_strided_slice %1 {offsets = [2, 1, 0], sizes = [16, 16, 4], strides = [1, 1, 1]} : vector<18x18x4xf32> to vector<16x16x4xf32>
    %17 = vector.shape_cast %16 : vector<16x16x4xf32> to vector<256x4xf32>
    %18 = vector.extract_strided_slice %1 {offsets = [2, 2, 0], sizes = [16, 16, 4], strides = [1, 1, 1]} : vector<18x18x4xf32> to vector<16x16x4xf32>
    %19 = vector.shape_cast %18 : vector<16x16x4xf32> to vector<256x4xf32>
    %20 = tpu.concatenate %3, %5, %7, %9, %11, %13, %15, %17, %19 in 1 : vector<256x4xf32>, vector<256x4xf32>, vector<256x4xf32>, vector<256x4xf32>, vector<256x4xf32>, vector<256x4xf32>, vector<256x4xf32>, vector<256x4xf32>, vector<256x4xf32> -> vector<256x36xf32>
    %c0_3 = arith.constant 0 : index
    %c0_4 = arith.constant 0 : index
    %21 = vector.load %arg3[%c0_3, %c0_4] : memref<36x8xf32, #tpu.memory_space<vmem>>, vector<36x8xf32>
    %cst = arith.constant dense<0.000000e+00> : vector<256x8xf32>
    %22 = tpu.matmul %20, %21, %cst {dimension_numbers = #tpu.dot_dimension_numbers<[1], [0], [0], [1], [0, 0, 1, 1], [], []>} : vector<256x36xf32>, vector<36x8xf32>, vector<256x8xf32> -> vector<256x8xf32>
    %c0_i32 = arith.constant 0 : i32
    %23 = arith.cmpi eq, %arg0, %c0_i32 : i32
    %c0_i32_5 = arith.constant 0 : i32
    %24 = arith.cmpi eq, %arg1, %c0_i32_5 : i32
    %25 = arith.andi %23, %24 : i1
    %26 = arith.extui %25 : i1 to i32
    %c0_i32_6 = arith.constant 0 : i32
    %27 = arith.cmpi ne, %26, %c0_i32_6 : i32
    scf.if %27 {
      %cst_13 = arith.constant 0.000000e+00 : f32
      %39 = vector.broadcast %cst_13 : f32 to vector<1x8xf32>
      %c0_14 = arith.constant 0 : index
      %c0_15 = arith.constant 0 : index
      %40 = vector.load %arg7[%c0_14, %c0_15] : memref<1x8xf32, #tpu.memory_space<vmem>>, vector<1x8xf32>
      tpu.vector_store %arg7[%c0_14, %c0_15], %39 {strides = array<i32>} : memref<1x8xf32, #tpu.memory_space<vmem>>, vector<1x8xf32>,
      %cst_16 = arith.constant 0.000000e+00 : f32
      %41 = vector.broadcast %cst_16 : f32 to vector<1x8xf32>
      %c0_17 = arith.constant 0 : index
      %c0_18 = arith.constant 0 : index
      %42 = vector.load %arg8[%c0_17, %c0_18] : memref<1x8xf32, #tpu.memory_space<vmem>>, vector<1x8xf32>
      tpu.vector_store %arg8[%c0_17, %c0_18], %41 {strides = array<i32>} : memref<1x8xf32, #tpu.memory_space<vmem>>, vector<1x8xf32>,
    } else {
    }
    %c0_i32_7 = arith.constant 0 : i32
    %28 = arith.cmpi eq, %arg0, %c0_i32_7 : i32
    %29 = arith.extui %28 : i1 to i32
    %c0_i32_8 = arith.constant 0 : i32
    %30 = arith.cmpi ne, %29, %c0_i32_8 : i32
    scf.if %30 {
      %c0_13 = arith.constant 0 : index
      %c0_14 = arith.constant 0 : index
      %39 = vector.load %arg7[%c0_13, %c0_14] : memref<1x8xf32, #tpu.memory_space<vmem>>, vector<1x8xf32>
      %cst_15 = arith.constant dense<0.000000e+00> : vector<8xf32>
      %40 = vector.multi_reduction <add>, %22, %cst_15 [0] : vector<256x8xf32> to vector<8xf32>
      %41 = vector.shape_cast %40 : vector<8xf32> to vector<1x8xf32>
      %42 = arith.addf %39, %41 : vector<1x8xf32>
      %c0_16 = arith.constant 0 : index
      %c0_17 = arith.constant 0 : index
      %43 = vector.load %arg7[%c0_16, %c0_17] : memref<1x8xf32, #tpu.memory_space<vmem>>, vector<1x8xf32>
      tpu.vector_store %arg7[%c0_16, %c0_17], %42 {strides = array<i32>} : memref<1x8xf32, #tpu.memory_space<vmem>>, vector<1x8xf32>,
      %c0_18 = arith.constant 0 : index
      %c0_19 = arith.constant 0 : index
      %44 = vector.load %arg8[%c0_18, %c0_19] : memref<1x8xf32, #tpu.memory_space<vmem>>, vector<1x8xf32>
      %45 = arith.mulf %22, %22 : vector<256x8xf32>
      %cst_20 = arith.constant dense<0.000000e+00> : vector<8xf32>
      %46 = vector.multi_reduction <add>, %45, %cst_20 [0] : vector<256x8xf32> to vector<8xf32>
      %47 = vector.shape_cast %46 : vector<8xf32> to vector<1x8xf32>
      %48 = arith.addf %44, %47 : vector<1x8xf32>
      %c0_21 = arith.constant 0 : index
      %c0_22 = arith.constant 0 : index
      %49 = vector.load %arg8[%c0_21, %c0_22] : memref<1x8xf32, #tpu.memory_space<vmem>>, vector<1x8xf32>
      tpu.vector_store %arg8[%c0_21, %c0_22], %48 {strides = array<i32>} : memref<1x8xf32, #tpu.memory_space<vmem>>, vector<1x8xf32>,
    } else {
    }
    %c1_i32 = arith.constant 1 : i32
    %31 = arith.cmpi eq, %arg0, %c1_i32 : i32
    %c0_i32_9 = arith.constant 0 : i32
    %32 = arith.cmpi eq, %arg1, %c0_i32_9 : i32
    %33 = arith.andi %31, %32 : i1
    %34 = arith.extui %33 : i1 to i32
    %c0_i32_10 = arith.constant 0 : i32
    %35 = arith.cmpi ne, %34, %c0_i32_10 : i32
    scf.if %35 {
      %c0_13 = arith.constant 0 : index
      %c0_14 = arith.constant 0 : index
      %39 = vector.load %arg7[%c0_13, %c0_14] : memref<1x8xf32, #tpu.memory_space<vmem>>, vector<1x8xf32>
      %cst_15 = arith.constant 0.001953125 : f32
      %40 = vector.broadcast %cst_15 : f32 to vector<1x8xf32>
      %41 = arith.mulf %39, %40 : vector<1x8xf32>
      %c0_16 = arith.constant 0 : index
      %c0_17 = arith.constant 0 : index
      %42 = vector.load %arg8[%c0_16, %c0_17] : memref<1x8xf32, #tpu.memory_space<vmem>>, vector<1x8xf32>
      %cst_18 = arith.constant 0.001953125 : f32
      %43 = vector.broadcast %cst_18 : f32 to vector<1x8xf32>
      %44 = arith.mulf %42, %43 : vector<1x8xf32>
      %45 = arith.mulf %41, %41 : vector<1x8xf32>
      %46 = arith.subf %44, %45 : vector<1x8xf32>
      %cst_19 = arith.constant 0.000000e+00 : f32
      %47 = vector.broadcast %cst_19 : f32 to vector<1x8xf32>
      %48 = arith.maximumf %46, %47 : vector<1x8xf32>
      %c0_20 = arith.constant 0 : index
      %c0_21 = arith.constant 0 : index
      %49 = vector.load %arg4[%c0_20, %c0_21] : memref<1x8xf32, #tpu.memory_space<vmem>>, vector<1x8xf32>
      %cst_22 = arith.constant 9.99999974E-6 : f32
      %50 = vector.broadcast %cst_22 : f32 to vector<1x8xf32>
      %51 = arith.addf %48, %50 : vector<1x8xf32>
      %52 = math.rsqrt %51 : vector<1x8xf32>
      %53 = arith.mulf %49, %52 : vector<1x8xf32>
      %c0_23 = arith.constant 0 : index
      %c0_24 = arith.constant 0 : index
      %54 = vector.load %arg9[%c0_23, %c0_24] : memref<1x8xf32, #tpu.memory_space<vmem>>, vector<1x8xf32>
      tpu.vector_store %arg9[%c0_23, %c0_24], %53 {strides = array<i32>} : memref<1x8xf32, #tpu.memory_space<vmem>>, vector<1x8xf32>,
      %c0_25 = arith.constant 0 : index
      %c0_26 = arith.constant 0 : index
      %55 = vector.load %arg5[%c0_25, %c0_26] : memref<1x8xf32, #tpu.memory_space<vmem>>, vector<1x8xf32>
      %56 = arith.mulf %41, %53 : vector<1x8xf32>
      %57 = arith.subf %55, %56 : vector<1x8xf32>
      %c0_27 = arith.constant 0 : index
      %c0_28 = arith.constant 0 : index
      %58 = vector.load %arg10[%c0_27, %c0_28] : memref<1x8xf32, #tpu.memory_space<vmem>>, vector<1x8xf32>
      tpu.vector_store %arg10[%c0_27, %c0_28], %57 {strides = array<i32>} : memref<1x8xf32, #tpu.memory_space<vmem>>, vector<1x8xf32>,
    } else {
    }
    %c1_i32_11 = arith.constant 1 : i32
    %36 = arith.cmpi eq, %arg0, %c1_i32_11 : i32
    %37 = arith.extui %36 : i1 to i32
    %c0_i32_12 = arith.constant 0 : i32
    %38 = arith.cmpi ne, %37, %c0_i32_12 : i32
    scf.if %38 {
      %c0_13 = arith.constant 0 : index
      %c0_14 = arith.constant 0 : index
      %39 = vector.load %arg9[%c0_13, %c0_14] : memref<1x8xf32, #tpu.memory_space<vmem>>, vector<1x8xf32>
      %40 = vector.broadcast %39 : vector<1x8xf32> to vector<256x8xf32>
      %41 = arith.mulf %22, %40 : vector<256x8xf32>
      %c0_15 = arith.constant 0 : index
      %c0_16 = arith.constant 0 : index
      %42 = vector.load %arg10[%c0_15, %c0_16] : memref<1x8xf32, #tpu.memory_space<vmem>>, vector<1x8xf32>
      %43 = vector.broadcast %42 : vector<1x8xf32> to vector<256x8xf32>
      %44 = arith.addf %41, %43 : vector<256x8xf32>
      %cst_17 = arith.constant 0.000000e+00 : f32
      %45 = vector.broadcast %cst_17 : f32 to vector<256x8xf32>
      %46 = arith.maximumf %44, %45 : vector<256x8xf32>
      %47 = tpu.transpose %46, [1, 0] : vector<256x8xf32> -> vector<8x256xf32>
      %c0_18 = arith.constant 0 : index
      %c0_19 = arith.constant 0 : index
      %c0_20 = arith.constant 0 : index
      %48 = vector.load %arg6[%c0_18, %c0_19, %c0_20] : memref<1x8x256xf32, #tpu.memory_space<vmem>>, vector<1x8x256xf32>
      %49 = vector.shape_cast %48 : vector<1x8x256xf32> to vector<8x256xf32>
      %50 = vector.shape_cast %47 : vector<8x256xf32> to vector<1x8x256xf32>
      tpu.vector_store %arg6[%c0_18, %c0_19, %c0_20], %50 {strides = array<i32>} : memref<1x8x256xf32, #tpu.memory_space<vmem>>, vector<1x8x256xf32>,
    } else {
    }
    return
  }
  func.func @transform_0(%arg0: i32, %arg1: i32) -> (i32, i32, i32, i32) {
    %c0_i32 = arith.constant 0 : i32
    %c0_i32_0 = arith.constant 0 : i32
    %c0_i32_1 = arith.constant 0 : i32
    %c0_i32_2 = arith.constant 0 : i32
    return %arg1, %c0_i32, %c0_i32_0, %c0_i32_1 : i32, i32, i32, i32
  }
  func.func @transform_1(%arg0: i32, %arg1: i32) -> (i32, i32) {
    %c0_i32 = arith.constant 0 : i32
    %c0_i32_0 = arith.constant 0 : i32
    %c0_i32_1 = arith.constant 0 : i32
    return %c0_i32, %c0_i32_0 : i32, i32
  }
  func.func @transform_2(%arg0: i32, %arg1: i32) -> (i32, i32) {
    %c0_i32 = arith.constant 0 : i32
    %c0_i32_0 = arith.constant 0 : i32
    %c0_i32_1 = arith.constant 0 : i32
    return %c0_i32, %c0_i32_0 : i32, i32
  }
  func.func @transform_3(%arg0: i32, %arg1: i32) -> (i32, i32) {
    %c0_i32 = arith.constant 0 : i32
    %c0_i32_0 = arith.constant 0 : i32
    %c0_i32_1 = arith.constant 0 : i32
    return %c0_i32, %c0_i32_0 : i32, i32
  }
  func.func @transform_4(%arg0: i32, %arg1: i32) -> (i32, i32, i32) {
    %0 = arith.muli %arg1, %arg0 : i32
    %c0_i32 = arith.constant 0 : i32
    %c0_i32_0 = arith.constant 0 : i32
    %c0_i32_1 = arith.constant 0 : i32
    return %0, %c0_i32, %c0_i32_0 : i32, i32, i32
  }
}

</mosaic_0001>

<llo_original>
// kernel: skeleton_block_forward.1
$region0: #{skeleton_block_forward.1}
  #allocation0 [shape = 'u32[]', space=smem, size = 0x4, offset = 0x4, fixed_abs, tag = 'smem constant byte address 0x4 - core index']
  #allocation1 [shape = 'u32[144,128]{1,0:T(1,128)}', space=vmem, size = 0x12000, scoped, tag = 'internal scratch']
  #allocation2 [shape = 'f32[1,8]{1,0:T(1,128)}', space=vmem, size = 0x200, scoped, tag = 'scratch operand']
  #allocation3 [shape = 'f32[1,8]{1,0:T(1,128)}', space=vmem, size = 0x200, scoped, tag = 'scratch operand']
  #allocation4 [shape = 'f32[1,8]{1,0:T(1,128)}', space=vmem, size = 0x200, scoped, tag = 'scratch operand']
  #allocation5 [shape = 'f32[1,8]{1,0:T(1,128)}', space=vmem, size = 0x200, scoped, tag = 'scratch operand']
  %s0 = inlined_call_operand.vmem [shape: f32[2,18,18,4], index: 0, kind: input, shape index: {}]
  %s1 = inlined_call_operand.vmem [shape: f32[36,8], index: 1, kind: input, shape index: {}]
  %s2 = inlined_call_operand.vmem [shape: f32[1,8], index: 2, kind: input, shape index: {}]
  %s3 = inlined_call_operand.vmem [shape: f32[1,8], index: 3, kind: input, shape index: {}]
  %s4 = inlined_call_operand.vmem [shape: f32[2,8,256], index: 4, kind: output, shape index: {}]
  %s5 = sld [smem:[#allocation0]]
  $region65: #{skeleton_block_forward.1} parent=0
    _
  %s7 = ssub.s32 1, %s5
  %s8 = scalar_select 0, %s7, %s5
  loop: start=0, step=1, limit=6
  $region2: #{skeleton_block_forward.1} parent=0 // loop_pre_header
    _
  $region3: #{skeleton_block_forward.1} parent=0 // loop_header
    %s10 = sphi 0, %s14
    %p11 = scmp.ge.s32.totalorder %s10, 6
    %s17 = sphi 0, %s29
    %s18 = sphi 0, %s25
    %s19 = sphi 0, %s17
    %s20 = sphi 0, %s18
    %s21 = sphi 0, %s19
    %s22 = sphi 0, %s20
    %s32 = sphi 0, %s34
    %s35 = sphi 0, %s32
    %s36 = sphi 0, %s35
    %s52 = sphi 0, %s36
    %s56 = sphi 0, %s56
    %s58 = sphi 0, %s56
    %s59 = sphi 0, %s58
    %s73 = sphi 0, %s59
    %s77 = sphi 0, %s77
    %s79 = sphi 0, %s77
    %s80 = sphi 0, %s79
    %s94 = sphi 0, %s80
    %s98 = sphi 0, %s98
    %s100 = sphi 0, %s98
    %s101 = sphi 0, %s100
    %s115 = sphi 0, %s101
    %s123 = sphi 0, %s125
    %s126 = sphi 0, %s123
    %s127 = sphi 0, %s126
    %s143 = sphi 0, %s127
  $region4: #{skeleton_block_forward.1} parent=0 // loop_header_branch
    %13 = sbr.rel (%p11) target = $region8
  $region5: #{skeleton_block_forward.1} parent=0 // loop_body
    %s15 = ssub.s32 %s10, 1
    %s16 = ssub.s32 %s10, 2
    %s23 = sadd.s32 1, %s18
    %p24 = scmp.ge.s32.totalorder %s23, 2
    %s25 = scalar_select %p24, 0, %s23
    %s26 = sadd.s32 1, %s17
    %s27 = scalar_select %p24, %s26, %s17
    %p28 = scmp.ge.s32.totalorder %s27, 2
    %s29 = scalar_select %p28, 0, %s27
    %s30 = ssub.s32 %s18, %s25
    %p31 = scmp.eq.s32.totalorder %s30, 0
    %s33 = sadd.s32 %s32, 1
    %s34 = scalar_select %p31, %s32, %s33
    %p37 = pneg %p31
    %p38 = scmp.eq.s32.totalorder %s10, 3
    %p39 = por %p37, %p38
    %p40 = scmp.ne.s32.totalorder %s32, %s35
    %p41 = scmp.eq.s32.totalorder %s10, 0
    %p42 = por %p40, %p41
    %p43 = scmp.ne.s32.totalorder %s32, %s35
    %p44 = scmp.eq.s32.totalorder %s15, 3
    %p45 = por %p43, %p44
    %p46 = scmp.ne.s32.totalorder %s35, %s36
    %p47 = scmp.eq.s32.totalorder %s15, 0
    %p48 = por %p46, %p47
    %p49 = scmp.ne.s32.totalorder %s35, %s36
    %p50 = scmp.eq.s32.totalorder %s16, 3
    %p51 = por %p49, %p50
    %p53 = scmp.ne.s32.totalorder %s36, %s52
    %p54 = scmp.eq.s32.totalorder %s16, 0
    %p55 = por %p53, %p54
    %s57 = sadd.s32 %s56, 1
    %p60 = scmp.eq.s32.totalorder %s10, 3
    %p61 = scmp.ne.s32.totalorder %s56, %s58
    %p62 = scmp.eq.s32.totalorder %s10, 0
    %p63 = por %p61, %p62
    %p64 = scmp.ne.s32.totalorder %s56, %s58
    %p65 = scmp.eq.s32.totalorder %s15, 3
    %p66 = por %p64, %p65
    %p67 = scmp.ne.s32.totalorder %s58, %s59
    %p68 = scmp.eq.s32.totalorder %s15, 0
    %p69 = por %p67, %p68
    %p70 = scmp.ne.s32.totalorder %s58, %s59
    %p71 = scmp.eq.s32.totalorder %s16, 3
    %p72 = por %p70, %p71
    %p74 = scmp.ne.s32.totalorder %s59, %s73
    %p75 = scmp.eq.s32.totalorder %s16, 0
    %p76 = por %p74, %p75
    %s78 = sadd.s32 %s77, 1
    %p81 = scmp.eq.s32.totalorder %s10, 3
    %p82 = scmp.ne.s32.totalorder %s77, %s79
    %p83 = scmp.eq.s32.totalorder %s10, 0
    %p84 = por %p82, %p83
    %p85 = scmp.ne.s32.totalorder %s77, %s79
    %p86 = scmp.eq.s32.totalorder %s15, 3
    %p87 = por %p85, %p86
    %p88 = scmp.ne.s32.totalorder %s79, %s80
    %p89 = scmp.eq.s32.totalorder %s15, 0
    %p90 = por %p88, %p89
    %p91 = scmp.ne.s32.totalorder %s79, %s80
    %p92 = scmp.eq.s32.totalorder %s16, 3
    %p93 = por %p91, %p92
    %p95 = scmp.ne.s32.totalorder %s80, %s94
    %p96 = scmp.eq.s32.totalorder %s16, 0
    %p97 = por %p95, %p96
    %s99 = sadd.s32 %s98, 1
    %p102 = scmp.eq.s32.totalorder %s10, 3
    %p103 = scmp.ne.s32.totalorder %s98, %s100
    %p104 = scmp.eq.s32.totalorder %s10, 0
    %p105 = por %p103, %p104
    %p106 = scmp.ne.s32.totalorder %s98, %s100
    %p107 = scmp.eq.s32.totalorder %s15, 3
    %p108 = por %p106, %p107
    %p109 = scmp.ne.s32.totalorder %s100, %s101
    %p110 = scmp.eq.s32.totalorder %s15, 0
    %p111 = por %p109, %p110
    %p112 = scmp.ne.s32.totalorder %s100, %s101
    %p113 = scmp.eq.s32.totalorder %s16, 3
    %p114 = por %p112, %p113
    %p116 = scmp.ne.s32.totalorder %s101, %s115
    %p117 = scmp.eq.s32.totalorder %s16, 0
    %p118 = por %p116, %p117
    %s119 = smul.u32 %s18, %s17
    %s120 = smul.u32 %s25, %s29
    %s121 = ssub.s32 %s119, %s120
    %p122 = scmp.eq.s32.totalorder %s121, 0
    %s124 = sadd.s32 %s123, 1
    %s125 = scalar_select %p122, %s123, %s124
    %p128 = pneg %p122
    %p129 = scmp.eq.s32.totalorder %s10, 3
    %p130 = por %p128, %p129
    %p131 = scmp.ne.s32.totalorder %s123, %s126
    %p132 = scmp.eq.s32.totalorder %s10, 0
    %p133 = por %p131, %p132
    %p134 = scmp.ne.s32.totalorder %s123, %s126
    %p135 = scmp.eq.s32.totalorder %s15, 3
    %p136 = por %p134, %p135
    %p137 = scmp.ne.s32.totalorder %s126, %s127
    %p138 = scmp.eq.s32.totalorder %s15, 0
    %p139 = por %p137, %p138
    %p140 = scmp.ne.s32.totalorder %s126, %s127
    %p141 = scmp.eq.s32.totalorder %s16, 3
    %p142 = por %p140, %p141
    %p144 = scmp.ne.s32.totalorder %s127, %s143
    %p145 = scmp.eq.s32.totalorder %s16, 0
    %p146 = por %p144, %p145
    %p147 = scmp.le.s32.totalorder 1, %s10
    %p148 = scmp.lt.s32.totalorder %s10, 5
    %p149 = pnand %p147, %p148
    %p150 = pneg %p149
    // Predicated region
    $region9: #{skeleton_block_forward.1} parent=5 // pred_check
      _
    $region10: #{skeleton_block_forward.1} parent=5 // pred_check_branch
      %152 = sbr.rel (%p149) target = $region12
    $region11: #{skeleton_block_forward.1} parent=5 // pred_region
      %s153 = ssub.s32 %s10, 1
      // Predicated region
      $region13: #{skeleton_block_forward.1} parent=11 // pred_check
        %p154 = pneg %p69
      $region14: #{skeleton_block_forward.1} parent=11 // pred_check_branch
        %156 = sbr.rel (%p154) target = $region16
      $region15: #{skeleton_block_forward.1} parent=11 // pred_region
        _
      $region16: #{skeleton_block_forward.1} parent=11 // pred_fallthru
        _
      // Predicated region
      $region17: #{skeleton_block_forward.1} parent=11 // pred_check
        %p157 = pneg %p90
      $region18: #{skeleton_block_forward.1} parent=11 // pred_check_branch
        %159 = sbr.rel (%p157) target = $region20
      $region19: #{skeleton_block_forward.1} parent=11 // pred_region
        _
      $region20: #{skeleton_block_forward.1} parent=11 // pred_fallthru
        _
      // Predicated region
      $region21: #{skeleton_block_forward.1} parent=11 // pred_check
        %p160 = pneg %p111
      $region22: #{skeleton_block_forward.1} parent=11 // pred_check_branch
        %162 = sbr.rel (%p160) target = $region24
      $region23: #{skeleton_block_forward.1} parent=11 // pred_region
        _
      $region24: #{skeleton_block_forward.1} parent=11 // pred_fallthru
        _
    $region12: #{skeleton_block_forward.1} parent=5 // pred_fallthru
      _
    %p163 = scmp.lt.s32.totalorder %s10, 4
    // Predicated region
    $region25: #{skeleton_block_forward.1} parent=5 // pred_check
      %p164 = pneg %p163
    $region26: #{skeleton_block_forward.1} parent=5 // pred_check_branch
      %166 = sbr.rel (%p164) target = $region28
    $region27: #{skeleton_block_forward.1} parent=5 // pred_region
      // Predicated region
      $region29: #{skeleton_block_forward.1} parent=27 // pred_check
        %p167 = pneg %p42
      $region30: #{skeleton_block_forward.1} parent=27 // pred_check_branch
        %169 = sbr.rel (%p167) target = $region32
      $region31: #{skeleton_block_forward.1} parent=27 // pred_region
        %p170 = scmp.lt.s32.totalorder %s18, 1
        %s171 = scalar_select %p170, %s18, 1
        %s172 = smul.addr %s171, 54
        %s173 = smul.addr %s172, 8
        %s174 = scalar_lea.vmem %s0, %s173
      $region32: #{skeleton_block_forward.1} parent=27 // pred_fallthru
        _
    $region28: #{skeleton_block_forward.1} parent=5 // pred_fallthru
      _
    %p175 = scmp.le.s32.totalorder 1, %s10
    %p176 = scmp.lt.s32.totalorder %s10, 5
    %p177 = pnand %p175, %p176
    %p178 = pneg %p177
    // Predicated region
    $region33: #{skeleton_block_forward.1} parent=5 // pred_check
      _
    $region34: #{skeleton_block_forward.1} parent=5 // pred_check_branch
      %180 = sbr.rel (%p177) target = $region36
    $region35: #{skeleton_block_forward.1} parent=5 // pred_region
      %s181 = ssub.s32 %s10, 1
      %p182 = scmp.lt.s32.totalorder %s20, 1
      %s183 = scalar_select %p182, %s20, 1
      %s184 = smul.addr %s183, 54
      %s185 = smul.addr %s184, 8
      %s186 = scalar_lea.vmem %s0, %s185
      %p187 = pneg %p48
      %p188 = pneg %p45
      %p189 = pneg %p69
      %p190 = pneg %p66
      %p191 = pneg %p90
      %p192 = pneg %p87
      %p193 = pneg %p111
      %p194 = pneg %p108
      %p195 = pneg %p139
      %p196 = pneg %p136
      %s197 = smul.u32 %s20, %s19
      %p198 = scmp.lt.s32.totalorder %s197, 1
      %s199 = scalar_select %p198, %s197, 1
      %s200 = smul.addr %s199, 2
      %s201 = smul.addr %s200, 8
      %s202 = scalar_lea.vmem %s4, %s201
      %p203 = scmp.lt.s32.totalorder %s20, 1
      %s204 = scalar_select %p203, %s20, 1
      %s205 = smul.addr %s204, 54
      %s206 = smul.addr %s205, 8
      %s207 = scalar_lea.vmem %s0, %s206
      %s208 = smul.u32 %s20, %s19
      %p209 = scmp.lt.s32.totalorder %s208, 1
      %s210 = scalar_select %p209, %s208, 1
      %s211 = smul.addr %s210, 2
      %s212 = smul.addr %s211, 8
      %s213 = scalar_lea.vmem %s4, %s212
      %s214 = smul.u32 %s20, %s19
      %v215 = vld [vmem:[%s207] sm:$0xff]
      %v216 = vld [vmem:[%s207 + $0x8] sm:$0xff]
      %v217 = vld [vmem:[%s207 + $0x10] sm:$0x3]
      %v218 = vld [vmem:[%s207 + $0x18] sm:$0xff]
      %v219 = vld [vmem:[%s207 + $0x20] sm:$0xff]
      %v220 = vld [vmem:[%s207 + $0x28] sm:$0x3]
      %v221 = vld [vmem:[%s207 + $0x30] sm:$0xff]
      %v222 = vld [vmem:[%s207 + $0x38] sm:$0xff]
      %v223 = vld [vmem:[%s207 + $0x40] sm:$0x3]
      %v224 = vld [vmem:[%s207 + $0x48] sm:$0xff]
      %v225 = vld [vmem:[%s207 + $0x50] sm:$0xff]
      %v226 = vld [vmem:[%s207 + $0x58] sm:$0x3]
      %v227 = vld [vmem:[%s207 + $0x60] sm:$0xff]
      %v228 = vld [vmem:[%s207 + $0x68] sm:$0xff]
      %v229 = vld [vmem:[%s207 + $0x70] sm:$0x3]
      %v230 = vld [vmem:[%s207 + $0x78] sm:$0xff]
      %v231 = vld [vmem:[%s207 + $0x80] sm:$0xff]
      %v232 = vld [vmem:[%s207 + $0x88] sm:$0x3]
      %v233 = vld [vmem:[%s207 + $0x90] sm:$0xff]
      %v234 = vld [vmem:[%s207 + $0x98] sm:$0xff]
      %v235 = vld [vmem:[%s207 + $0xa0] sm:$0x3]
      %v236 = vld [vmem:[%s207 + $0xa8] sm:$0xff]
      %v237 = vld [vmem:[%s207 + $0xb0] sm:$0xff]
      %v238 = vld [vmem:[%s207 + $0xb8] sm:$0x3]
      %v239 = vld [vmem:[%s207 + $0xc0] sm:$0xff]
      %v240 = vld [vmem:[%s207 + $0xc8] sm:$0xff]
      %v241 = vld [vmem:[%s207 + $0xd0] sm:$0x3]
      %v242 = vld [vmem:[%s207 + $0xd8] sm:$0xff]
      %v243 = vld [vmem:[%s207 + $0xe0] sm:$0xff]
      %v244 = vld [vmem:[%s207 + $0xe8] sm:$0x3]
      %v245 = vld [vmem:[%s207 + $0xf0] sm:$0xff]
      %v246 = vld [vmem:[%s207 + $0xf8] sm:$0xff]
      %v247 = vld [vmem:[%s207 + $0x100] sm:$0x3]
      %v248 = vld [vmem:[%s207 + $0x108] sm:$0xff]
      %v249 = vld [vmem:[%s207 + $0x110] sm:$0xff]
      %v250 = vld [vmem:[%s207 + $0x118] sm:$0x3]
      %v251 = vld [vmem:[%s207 + $0x120] sm:$0xff]
      %v252 = vld [vmem:[%s207 + $0x128] sm:$0xff]
      %v253 = vld [vmem:[%s207 + $0x130] sm:$0x3]
      %v254 = vld [vmem:[%s207 + $0x138] sm:$0xff]
      %v255 = vld [vmem:[%s207 + $0x140] sm:$0xff]
      %v256 = vld [vmem:[%s207 + $0x148] sm:$0x3]
      %v257 = vld [vmem:[%s207 + $0x150] sm:$0xff]
      %v258 = vld [vmem:[%s207 + $0x158] sm:$0xff]
      %v259 = vld [vmem:[%s207 + $0x160] sm:$0x3]
      %v260 = vld [vmem:[%s207 + $0x168] sm:$0xff]
      %v261 = vld [vmem:[%s207 + $0x170] sm:$0xff]
      %v262 = vld [vmem:[%s207 + $0x178] sm:$0x3]
      %v263 = vld [vmem:[%s207 + $0x180] sm:$0xff]
      %v264 = vld [vmem:[%s207 + $0x188] sm:$0xff]
      %v265 = vld [vmem:[%s207 + $0x190] sm:$0x3]
      %v266 = vld [vmem:[%s207 + $0x198] sm:$0xff]
      %v267 = vld [vmem:[%s207 + $0x1a0] sm:$0xff]
      %v268 = vld [vmem:[%s207 + $0x1a8] sm:$0x3]
      %vm317 = vcmask 1046528
      %v318 = vrot.slane %v215, 1
      %v319 = vrot.slane %v216, 1
      %v320 = vsel %vm317, %v318, %v319
      %v321 = vrot.slane %v217, 1
      %v322 = vsel %vm317, %v319, %v321
      %v323 = vrot.slane %v218, 1
      %v324 = vrot.slane %v219, 1
      %v325 = vsel %vm317, %v323, %v324
      %v326 = vrot.slane %v220, 1
      %v327 = vsel %vm317, %v324, %v326
      %v328 = vrot.slane %v221, 1
      %v329 = vrot.slane %v222, 1
      %v330 = vsel %vm317, %v328, %v329
      %v331 = vrot.slane %v223, 1
      %v332 = vsel %vm317, %v329, %v331
      %v333 = vrot.slane %v224, 1
      %v334 = vrot.slane %v225, 1
      %v335 = vsel %vm317, %v333, %v334
      %v336 = vrot.slane %v226, 1
      %v337 = vsel %vm317, %v334, %v336
      %v338 = vrot.slane %v227, 1
      %v339 = vrot.slane %v228, 1
      %v340 = vsel %vm317, %v338, %v339
      %v341 = vrot.slane %v229, 1
      %v342 = vsel %vm317, %v339, %v341
      %v343 = vrot.slane %v230, 1
      %v344 = vrot.slane %v231, 1
      %v345 = vsel %vm317, %v343, %v344
      %v346 = vrot.slane %v232, 1
      %v347 = vsel %vm317, %v344, %v346
      %v348 = vrot.slane %v233, 1
      %v349 = vrot.slane %v234, 1
      %v350 = vsel %vm317, %v348, %v349
      %v351 = vrot.slane %v235, 1
      %v352 = vsel %vm317, %v349, %v351
      %v353 = vrot.slane %v236, 1
      %v354 = vrot.slane %v237, 1
      %v355 = vsel %vm317, %v353, %v354
      %v356 = vrot.slane %v238, 1
      %v357 = vsel %vm317, %v354, %v356
      %v358 = vrot.slane %v239, 1
      %v359 = vrot.slane %v240, 1
      %v360 = vsel %vm317, %v358, %v359
      %v361 = vrot.slane %v241, 1
      %v362 = vsel %vm317, %v359, %v361
      %v363 = vrot.slane %v242, 1
      %v364 = vrot.slane %v243, 1
      %v365 = vsel %vm317, %v363, %v364
      %v366 = vrot.slane %v244, 1
      %v367 = vsel %vm317, %v364, %v366
      %v368 = vrot.slane %v245, 1
      %v369 = vrot.slane %v246, 1
      %v370 = vsel %vm317, %v368, %v369
      %v371 = vrot.slane %v247, 1
      %v372 = vsel %vm317, %v369, %v371
      %v373 = vrot.slane %v248, 1
      %v374 = vrot.slane %v249, 1
      %v375 = vsel %vm317, %v373, %v374
      %v376 = vrot.slane %v250, 1
      %v377 = vsel %vm317, %v374, %v376
      %v378 = vrot.slane %v251, 1
      %v379 = vrot.slane %v252, 1
      %v380 = vsel %vm317, %v378, %v379
      %v381 = vrot.slane %v253, 1
      %v382 = vsel %vm317, %v379, %v381
      %v383 = vrot.slane %v254, 1
      %v384 = vrot.slane %v255, 1
      %v385 = vsel %vm317, %v383, %v384
      %v386 = vrot.slane %v256, 1
      %v387 = vsel %vm317, %v384, %v386
      %v388 = vrot.slane %v257, 1
      %v389 = vrot.slane %v258, 1
      %v390 = vsel %vm317, %v388, %v389
      %v391 = vrot.slane %v259, 1
      %v392 = vsel %vm317, %v389, %v391
      %v393 = vrot.slane %v260, 1
      %v394 = vrot.slane %v261, 1
      %v395 = vsel %vm317, %v393, %v394
      %v396 = vrot.slane %v262, 1
      %v397 = vsel %vm317, %v394, %v396
      %vm398 = vcmask 1045504
      %v399 = vrot.slane %v215, 2
      %v400 = vrot.slane %v216, 2
      %v401 = vsel %vm398, %v399, %v400
      %v402 = vrot.slane %v217, 2
      %v403 = vsel %vm398, %v400, %v402
      %v404 = vrot.slane %v218, 2
      %v405 = vrot.slane %v219, 2
      %v406 = vsel %vm398, %v404, %v405
      %v407 = vrot.slane %v220, 2
      %v408 = vsel %vm398, %v405, %v407
      %v409 = vrot.slane %v221, 2
      %v410 = vrot.slane %v222, 2
      %v411 = vsel %vm398, %v409, %v410
      %v412 = vrot.slane %v223, 2
      %v413 = vsel %vm398, %v410, %v412
      %v414 = vrot.slane %v224, 2
      %v415 = vrot.slane %v225, 2
      %v416 = vsel %vm398, %v414, %v415
      %v417 = vrot.slane %v226, 2
      %v418 = vsel %vm398, %v415, %v417
      %v419 = vrot.slane %v227, 2
      %v420 = vrot.slane %v228, 2
      %v421 = vsel %vm398, %v419, %v420
      %v422 = vrot.slane %v229, 2
      %v423 = vsel %vm398, %v420, %v422
      %v424 = vrot.slane %v230, 2
      %v425 = vrot.slane %v231, 2
      %v426 = vsel %vm398, %v424, %v425
      %v427 = vrot.slane %v232, 2
      %v428 = vsel %vm398, %v425, %v427
      %v429 = vrot.slane %v233, 2
      %v430 = vrot.slane %v234, 2
      %v431 = vsel %vm398, %v429, %v430
      %v432 = vrot.slane %v235, 2
      %v433 = vsel %vm398, %v430, %v432
      %v434 = vrot.slane %v236, 2
      %v435 = vrot.slane %v237, 2
      %v436 = vsel %vm398, %v434, %v435
      %v437 = vrot.slane %v238, 2
      %v438 = vsel %vm398, %v435, %v437
      %v439 = vrot.slane %v239, 2
      %v440 = vrot.slane %v240, 2
      %v441 = vsel %vm398, %v439, %v440
      %v442 = vrot.slane %v241, 2
      %v443 = vsel %vm398, %v440, %v442
      %v444 = vrot.slane %v242, 2
      %v445 = vrot.slane %v243, 2
      %v446 = vsel %vm398, %v444, %v445
      %v447 = vrot.slane %v244, 2
      %v448 = vsel %vm398, %v445, %v447
      %v449 = vrot.slane %v245, 2
      %v450 = vrot.slane %v246, 2
      %v451 = vsel %vm398, %v449, %v450
      %v452 = vrot.slane %v247, 2
      %v453 = vsel %vm398, %v450, %v452
      %v454 = vrot.slane %v248, 2
      %v455 = vrot.slane %v249, 2
      %v456 = vsel %vm398, %v454, %v455
      %v457 = vrot.slane %v250, 2
      %v458 = vsel %vm398, %v455, %v457
      %v459 = vrot.slane %v251, 2
      %v460 = vrot.slane %v252, 2
      %v461 = vsel %vm398, %v459, %v460
      %v462 = vrot.slane %v253, 2
      %v463 = vsel %vm398, %v460, %v462
      %v464 = vrot.slane %v254, 2
      %v465 = vrot.slane %v255, 2
      %v466 = vsel %vm398, %v464, %v465
      %v467 = vrot.slane %v256, 2
      %v468 = vsel %vm398, %v465, %v467
      %v469 = vrot.slane %v257, 2
      %v470 = vrot.slane %v258, 2
      %v471 = vsel %vm398, %v469, %v470
      %v472 = vrot.slane %v259, 2
      %v473 = vsel %vm398, %v470, %v472
      %v474 = vrot.slane %v260, 2
      %v475 = vrot.slane %v261, 2
      %v476 = vsel %vm398, %v474, %v475
      %v477 = vrot.slane %v262, 2
      %v478 = vsel %vm398, %v475, %v477
      %v482 = vrot.slane %v263, 1
      %v483 = vrot.slane %v264, 1
      %v484 = vsel %vm317, %v482, %v483
      %v485 = vrot.slane %v265, 1
      %v486 = vsel %vm317, %v483, %v485
      %v487 = vrot.slane %v263, 2
      %v488 = vrot.slane %v264, 2
      %v489 = vsel %vm398, %v487, %v488
      %v490 = vrot.slane %v265, 2
      %v491 = vsel %vm398, %v488, %v490
      %v495 = vrot.slane %v266, 1
      %v496 = vrot.slane %v267, 1
      %v497 = vsel %vm317, %v495, %v496
      %v498 = vrot.slane %v268, 1
      %v499 = vsel %vm317, %v496, %v498
      %v500 = vrot.slane %v266, 2
      %v501 = vrot.slane %v267, 2
      %v502 = vsel %vm398, %v500, %v501
      %v503 = vrot.slane %v268, 2
      %v504 = vsel %vm398, %v501, %v503
      %505 = vrot.lane.b32.xlu0 %v320, 4
      %v506 = vpop.permute.xlu0 %505
      %507 = vrot.lane.b32.xlu0 %v322, 4
      %v508 = vpop.permute.xlu0 %507
      %509 = vrot.lane.b32.xlu0 %v325, 4
      %v510 = vpop.permute.xlu0 %509
      %511 = vrot.lane.b32.xlu0 %v327, 4
      %v512 = vpop.permute.xlu0 %511
      %513 = vrot.lane.b32.xlu0 %v330, 4
      %v514 = vpop.permute.xlu0 %513
      %515 = vrot.lane.b32.xlu0 %v332, 4
      %v516 = vpop.permute.xlu0 %515
      %517 = vrot.lane.b32.xlu0 %v335, 4
      %v518 = vpop.permute.xlu0 %517
      %519 = vrot.lane.b32.xlu0 %v337, 4
      %v520 = vpop.permute.xlu0 %519
      %521 = vrot.lane.b32.xlu0 %v340, 4
      %v522 = vpop.permute.xlu0 %521
      %523 = vrot.lane.b32.xlu0 %v342, 4
      %v524 = vpop.permute.xlu0 %523
      %525 = vrot.lane.b32.xlu0 %v345, 4
      %v526 = vpop.permute.xlu0 %525
      %527 = vrot.lane.b32.xlu0 %v347, 4
      %v528 = vpop.permute.xlu0 %527
      %529 = vrot.lane.b32.xlu0 %v350, 4
      %v530 = vpop.permute.xlu0 %529
      %531 = vrot.lane.b32.xlu0 %v352, 4
      %v532 = vpop.permute.xlu0 %531
      %533 = vrot.lane.b32.xlu0 %v355, 4
      %v534 = vpop.permute.xlu0 %533
      %535 = vrot.lane.b32.xlu0 %v357, 4
      %v536 = vpop.permute.xlu0 %535
      %537 = vrot.lane.b32.xlu0 %v360, 4
      %v538 = vpop.permute.xlu0 %537
      %539 = vrot.lane.b32.xlu0 %v362, 4
      %v540 = vpop.permute.xlu0 %539
      %541 = vrot.lane.b32.xlu0 %v365, 4
      %v542 = vpop.permute.xlu0 %541
      %543 = vrot.lane.b32.xlu0 %v367, 4
      %v544 = vpop.permute.xlu0 %543
      %545 = vrot.lane.b32.xlu0 %v370, 4
      %v546 = vpop.permute.xlu0 %545
      %547 = vrot.lane.b32.xlu0 %v372, 4
      %v548 = vpop.permute.xlu0 %547
      %549 = vrot.lane.b32.xlu0 %v375, 4
      %v550 = vpop.permute.xlu0 %549
      %551 = vrot.lane.b32.xlu0 %v377, 4
      %v552 = vpop.permute.xlu0 %551
      %553 = vrot.lane.b32.xlu0 %v380, 4
      %v554 = vpop.permute.xlu0 %553
      %555 = vrot.lane.b32.xlu0 %v382, 4
      %v556 = vpop.permute.xlu0 %555
      %557 = vrot.lane.b32.xlu0 %v385, 4
      %v558 = vpop.permute.xlu0 %557
      %559 = vrot.lane.b32.xlu0 %v387, 4
      %v560 = vpop.permute.xlu0 %559
      %561 = vrot.lane.b32.xlu0 %v390, 4
      %v562 = vpop.permute.xlu0 %561
      %563 = vrot.lane.b32.xlu0 %v392, 4
      %v564 = vpop.permute.xlu0 %563
      %565 = vrot.lane.b32.xlu0 %v395, 4
      %v566 = vpop.permute.xlu0 %565
      %567 = vrot.lane.b32.xlu0 %v397, 4
      %v568 = vpop.permute.xlu0 %567
      %601 = vrot.lane.b32.xlu0 %v401, 8
      %v602 = vpop.permute.xlu0 %601
      %603 = vrot.lane.b32.xlu0 %v403, 8
      %v604 = vpop.permute.xlu0 %603
      %605 = vrot.lane.b32.xlu0 %v406, 8
      %v606 = vpop.permute.xlu0 %605
      %607 = vrot.lane.b32.xlu0 %v408, 8
      %v608 = vpop.permute.xlu0 %607
      %609 = vrot.lane.b32.xlu0 %v411, 8
      %v610 = vpop.permute.xlu0 %609
      %611 = vrot.lane.b32.xlu0 %v413, 8
      %v612 = vpop.permute.xlu0 %611
      %613 = vrot.lane.b32.xlu0 %v416, 8
      %v614 = vpop.permute.xlu0 %613
      %615 = vrot.lane.b32.xlu0 %v418, 8
      %v616 = vpop.permute.xlu0 %615
      %617 = vrot.lane.b32.xlu0 %v421, 8
      %v618 = vpop.permute.xlu0 %617
      %619 = vrot.lane.b32.xlu0 %v423, 8
      %v620 = vpop.permute.xlu0 %619
      %621 = vrot.lane.b32.xlu0 %v426, 8
      %v622 = vpop.permute.xlu0 %621
      %623 = vrot.lane.b32.xlu0 %v428, 8
      %v624 = vpop.permute.xlu0 %623
      %625 = vrot.lane.b32.xlu0 %v431, 8
      %v626 = vpop.permute.xlu0 %625
      %627 = vrot.lane.b32.xlu0 %v433, 8
      %v628 = vpop.permute.xlu0 %627
      %629 = vrot.lane.b32.xlu0 %v436, 8
      %v630 = vpop.permute.xlu0 %629
      %631 = vrot.lane.b32.xlu0 %v438, 8
      %v632 = vpop.permute.xlu0 %631
      %633 = vrot.lane.b32.xlu0 %v441, 8
      %v634 = vpop.permute.xlu0 %633
      %635 = vrot.lane.b32.xlu0 %v443, 8
      %v636 = vpop.permute.xlu0 %635
      %637 = vrot.lane.b32.xlu0 %v446, 8
      %v638 = vpop.permute.xlu0 %637
      %639 = vrot.lane.b32.xlu0 %v448, 8
      %v640 = vpop.permute.xlu0 %639
      %641 = vrot.lane.b32.xlu0 %v451, 8
      %v642 = vpop.permute.xlu0 %641
      %643 = vrot.lane.b32.xlu0 %v453, 8
      %v644 = vpop.permute.xlu0 %643
      %645 = vrot.lane.b32.xlu0 %v456, 8
      %v646 = vpop.permute.xlu0 %645
      %647 = vrot.lane.b32.xlu0 %v458, 8
      %v648 = vpop.permute.xlu0 %647
      %649 = vrot.lane.b32.xlu0 %v461, 8
      %v650 = vpop.permute.xlu0 %649
      %651 = vrot.lane.b32.xlu0 %v463, 8
      %v652 = vpop.permute.xlu0 %651
      %653 = vrot.lane.b32.xlu0 %v466, 8
      %v654 = vpop.permute.xlu0 %653
      %655 = vrot.lane.b32.xlu0 %v468, 8
      %v656 = vpop.permute.xlu0 %655
      %657 = vrot.lane.b32.xlu0 %v471, 8
      %v658 = vpop.permute.xlu0 %657
      %659 = vrot.lane.b32.xlu0 %v473, 8
      %v660 = vpop.permute.xlu0 %659
      %661 = vrot.lane.b32.xlu0 %v476, 8
      %v662 = vpop.permute.xlu0 %661
      %663 = vrot.lane.b32.xlu0 %v478, 8
      %v664 = vpop.permute.xlu0 %663
      %697 = vrot.lane.b32.xlu0 %v218, 12
      %v698 = vpop.permute.xlu0 %697
      %699 = vrot.lane.b32.xlu0 %v219, 12
      %v700 = vpop.permute.xlu0 %699
      %701 = vrot.lane.b32.xlu0 %v221, 12
      %v702 = vpop.permute.xlu0 %701
      %703 = vrot.lane.b32.xlu0 %v222, 12
      %v704 = vpop.permute.xlu0 %703
      %705 = vrot.lane.b32.xlu0 %v224, 12
      %v706 = vpop.permute.xlu0 %705
      %707 = vrot.lane.b32.xlu0 %v225, 12
      %v708 = vpop.permute.xlu0 %707
      %709 = vrot.lane.b32.xlu0 %v227, 12
      %v710 = vpop.permute.xlu0 %709
      %711 = vrot.lane.b32.xlu0 %v228, 12
      %v712 = vpop.permute.xlu0 %711
      %713 = vrot.lane.b32.xlu0 %v230, 12
      %v714 = vpop.permute.xlu0 %713
      %715 = vrot.lane.b32.xlu0 %v231, 12
      %v716 = vpop.permute.xlu0 %715
      %717 = vrot.lane.b32.xlu0 %v233, 12
      %v718 = vpop.permute.xlu0 %717
      %719 = vrot.lane.b32.xlu0 %v234, 12
      %v720 = vpop.permute.xlu0 %719
      %721 = vrot.lane.b32.xlu0 %v236, 12
      %v722 = vpop.permute.xlu0 %721
      %723 = vrot.lane.b32.xlu0 %v237, 12
      %v724 = vpop.permute.xlu0 %723
      %725 = vrot.lane.b32.xlu0 %v239, 12
      %v726 = vpop.permute.xlu0 %725
      %727 = vrot.lane.b32.xlu0 %v240, 12
      %v728 = vpop.permute.xlu0 %727
      %729 = vrot.lane.b32.xlu0 %v242, 12
      %v730 = vpop.permute.xlu0 %729
      %731 = vrot.lane.b32.xlu0 %v243, 12
      %v732 = vpop.permute.xlu0 %731
      %733 = vrot.lane.b32.xlu0 %v245, 12
      %v734 = vpop.permute.xlu0 %733
      %735 = vrot.lane.b32.xlu0 %v246, 12
      %v736 = vpop.permute.xlu0 %735
      %737 = vrot.lane.b32.xlu0 %v248, 12
      %v738 = vpop.permute.xlu0 %737
      %739 = vrot.lane.b32.xlu0 %v249, 12
      %v740 = vpop.permute.xlu0 %739
      %741 = vrot.lane.b32.xlu0 %v251, 12
      %v742 = vpop.permute.xlu0 %741
      %743 = vrot.lane.b32.xlu0 %v252, 12
      %v744 = vpop.permute.xlu0 %743
      %745 = vrot.lane.b32.xlu0 %v254, 12
      %v746 = vpop.permute.xlu0 %745
      %747 = vrot.lane.b32.xlu0 %v255, 12
      %v748 = vpop.permute.xlu0 %747
      %749 = vrot.lane.b32.xlu0 %v257, 12
      %v750 = vpop.permute.xlu0 %749
      %751 = vrot.lane.b32.xlu0 %v258, 12
      %v752 = vpop.permute.xlu0 %751
      %753 = vrot.lane.b32.xlu0 %v260, 12
      %v754 = vpop.permute.xlu0 %753
      %755 = vrot.lane.b32.xlu0 %v261, 12
      %v756 = vpop.permute.xlu0 %755
      %757 = vrot.lane.b32.xlu0 %v263, 12
      %v758 = vpop.permute.xlu0 %757
      %759 = vrot.lane.b32.xlu0 %v264, 12
      %v760 = vpop.permute.xlu0 %759
      %793 = vrot.lane.b32.xlu0 %v325, 16
      %v794 = vpop.permute.xlu0 %793
      %795 = vrot.lane.b32.xlu0 %v327, 16
      %v796 = vpop.permute.xlu0 %795
      %797 = vrot.lane.b32.xlu0 %v330, 16
      %v798 = vpop.permute.xlu0 %797
      %799 = vrot.lane.b32.xlu0 %v332, 16
      %v800 = vpop.permute.xlu0 %799
      %801 = vrot.lane.b32.xlu0 %v335, 16
      %v802 = vpop.permute.xlu0 %801
      %803 = vrot.lane.b32.xlu0 %v337, 16
      %v804 = vpop.permute.xlu0 %803
      %805 = vrot.lane.b32.xlu0 %v340, 16
      %v806 = vpop.permute.xlu0 %805
      %807 = vrot.lane.b32.xlu0 %v342, 16
      %v808 = vpop.permute.xlu0 %807
      %809 = vrot.lane.b32.xlu0 %v345, 16
      %v810 = vpop.permute.xlu0 %809
      %811 = vrot.lane.b32.xlu0 %v347, 16
      %v812 = vpop.permute.xlu0 %811
      %813 = vrot.lane.b32.xlu0 %v350, 16
      %v814 = vpop.permute.xlu0 %813
      %815 = vrot.lane.b32.xlu0 %v352, 16
      %v816 = vpop.permute.xlu0 %815
      %817 = vrot.lane.b32.xlu0 %v355, 16
      %v818 = vpop.permute.xlu0 %817
      %819 = vrot.lane.b32.xlu0 %v357, 16
      %v820 = vpop.permute.xlu0 %819
      %821 = vrot.lane.b32.xlu0 %v360, 16
      %v822 = vpop.permute.xlu0 %821
      %823 = vrot.lane.b32.xlu0 %v362, 16
      %v824 = vpop.permute.xlu0 %823
      %825 = vrot.lane.b32.xlu0 %v365, 16
      %v826 = vpop.permute.xlu0 %825
      %827 = vrot.lane.b32.xlu0 %v367, 16
      %v828 = vpop.permute.xlu0 %827
      %829 = vrot.lane.b32.xlu0 %v370, 16
      %v830 = vpop.permute.xlu0 %829
      %831 = vrot.lane.b32.xlu0 %v372, 16
      %v832 = vpop.permute.xlu0 %831
      %833 = vrot.lane.b32.xlu0 %v375, 16
      %v834 = vpop.permute.xlu0 %833
      %835 = vrot.lane.b32.xlu0 %v377, 16
      %v836 = vpop.permute.xlu0 %835
      %837 = vrot.lane.b32.xlu0 %v380, 16
      %v838 = vpop.permute.xlu0 %837
      %839 = vrot.lane.b32.xlu0 %v382, 16
      %v840 = vpop.permute.xlu0 %839
      %841 = vrot.lane.b32.xlu0 %v385, 16
      %v842 = vpop.permute.xlu0 %841
      %843 = vrot.lane.b32.xlu0 %v387, 16
      %v844 = vpop.permute.xlu0 %843
      %845 = vrot.lane.b32.xlu0 %v390, 16
      %v846 = vpop.permute.xlu0 %845
      %847 = vrot.lane.b32.xlu0 %v392, 16
      %v848 = vpop.permute.xlu0 %847
      %849 = vrot.lane.b32.xlu0 %v395, 16
      %v850 = vpop.permute.xlu0 %849
      %851 = vrot.lane.b32.xlu0 %v397, 16
      %v852 = vpop.permute.xlu0 %851
      %853 = vrot.lane.b32.xlu0 %v484, 16
      %v854 = vpop.permute.xlu0 %853
      %855 = vrot.lane.b32.xlu0 %v486, 16
      %v856 = vpop.permute.xlu0 %855
      %889 = vrot.lane.b32.xlu0 %v406, 20
      %v890 = vpop.permute.xlu0 %889
      %891 = vrot.lane.b32.xlu0 %v408, 20
      %v892 = vpop.permute.xlu0 %891
      %893 = vrot.lane.b32.xlu0 %v411, 20
      %v894 = vpop.permute.xlu0 %893
      %895 = vrot.lane.b32.xlu0 %v413, 20
      %v896 = vpop.permute.xlu0 %895
      %897 = vrot.lane.b32.xlu0 %v416, 20
      %v898 = vpop.permute.xlu0 %897
      %899 = vrot.lane.b32.xlu0 %v418, 20
      %v900 = vpop.permute.xlu0 %899
      %901 = vrot.lane.b32.xlu0 %v421, 20
      %v902 = vpop.permute.xlu0 %901
      %903 = vrot.lane.b32.xlu0 %v423, 20
      %v904 = vpop.permute.xlu0 %903
      %905 = vrot.lane.b32.xlu0 %v426, 20
      %v906 = vpop.permute.xlu0 %905
      %907 = vrot.lane.b32.xlu0 %v428, 20
      %v908 = vpop.permute.xlu0 %907
      %909 = vrot.lane.b32.xlu0 %v431, 20
      %v910 = vpop.permute.xlu0 %909
      %911 = vrot.lane.b32.xlu0 %v433, 20
      %v912 = vpop.permute.xlu0 %911
      %913 = vrot.lane.b32.xlu0 %v436, 20
      %v914 = vpop.permute.xlu0 %913
      %915 = vrot.lane.b32.xlu0 %v438, 20
      %v916 = vpop.permute.xlu0 %915
      %917 = vrot.lane.b32.xlu0 %v441, 20
      %v918 = vpop.permute.xlu0 %917
      %919 = vrot.lane.b32.xlu0 %v443, 20
      %v920 = vpop.permute.xlu0 %919
      %921 = vrot.lane.b32.xlu0 %v446, 20
      %v922 = vpop.permute.xlu0 %921
      %923 = vrot.lane.b32.xlu0 %v448, 20
      %v924 = vpop.permute.xlu0 %923
      %925 = vrot.lane.b32.xlu0 %v451, 20
      %v926 = vpop.permute.xlu0 %925
      %927 = vrot.lane.b32.xlu0 %v453, 20
      %v928 = vpop.permute.xlu0 %927
      %929 = vrot.lane.b32.xlu0 %v456, 20
      %v930 = vpop.permute.xlu0 %929
      %931 = vrot.lane.b32.xlu0 %v458, 20
      %v932 = vpop.permute.xlu0 %931
      %933 = vrot.lane.b32.xlu0 %v461, 20
      %v934 = vpop.permute.xlu0 %933
      %935 = vrot.lane.b32.xlu0 %v463, 20
      %v936 = vpop.permute.xlu0 %935
      %937 = vrot.lane.b32.xlu0 %v466, 20
      %v938 = vpop.permute.xlu0 %937
      %939 = vrot.lane.b32.xlu0 %v468, 20
      %v940 = vpop.permute.xlu0 %939
      %941 = vrot.lane.b32.xlu0 %v471, 20
      %v942 = vpop.permute.xlu0 %941
      %943 = vrot.lane.b32.xlu0 %v473, 20
      %v944 = vpop.permute.xlu0 %943
      %945 = vrot.lane.b32.xlu0 %v476, 20
      %v946 = vpop.permute.xlu0 %945
      %947 = vrot.lane.b32.xlu0 %v478, 20
      %v948 = vpop.permute.xlu0 %947
      %949 = vrot.lane.b32.xlu0 %v489, 20
      %v950 = vpop.permute.xlu0 %949
      %951 = vrot.lane.b32.xlu0 %v491, 20
      %v952 = vpop.permute.xlu0 %951
      %985 = vrot.lane.b32.xlu0 %v221, 24
      %v986 = vpop.permute.xlu0 %985
      %987 = vrot.lane.b32.xlu0 %v222, 24
      %v988 = vpop.permute.xlu0 %987
      %989 = vrot.lane.b32.xlu0 %v224, 24
      %v990 = vpop.permute.xlu0 %989
      %991 = vrot.lane.b32.xlu0 %v225, 24
      %v992 = vpop.permute.xlu0 %991
      %993 = vrot.lane.b32.xlu0 %v227, 24
      %v994 = vpop.permute.xlu0 %993
      %995 = vrot.lane.b32.xlu0 %v228, 24
      %v996 = vpop.permute.xlu0 %995
      %997 = vrot.lane.b32.xlu0 %v230, 24
      %v998 = vpop.permute.xlu0 %997
      %999 = vrot.lane.b32.xlu0 %v231, 24
      %v1000 = vpop.permute.xlu0 %999
      %1001 = vrot.lane.b32.xlu0 %v233, 24
      %v1002 = vpop.permute.xlu0 %1001
      %1003 = vrot.lane.b32.xlu0 %v234, 24
      %v1004 = vpop.permute.xlu0 %1003
      %1005 = vrot.lane.b32.xlu0 %v236, 24
      %v1006 = vpop.permute.xlu0 %1005
      %1007 = vrot.lane.b32.xlu0 %v237, 24
      %v1008 = vpop.permute.xlu0 %1007
      %1009 = vrot.lane.b32.xlu0 %v239, 24
      %v1010 = vpop.permute.xlu0 %1009
      %1011 = vrot.lane.b32.xlu0 %v240, 24
      %v1012 = vpop.permute.xlu0 %1011
      %1013 = vrot.lane.b32.xlu0 %v242, 24
      %v1014 = vpop.permute.xlu0 %1013
      %1015 = vrot.lane.b32.xlu0 %v243, 24
      %v1016 = vpop.permute.xlu0 %1015
      %1017 = vrot.lane.b32.xlu0 %v245, 24
      %v1018 = vpop.permute.xlu0 %1017
      %1019 = vrot.lane.b32.xlu0 %v246, 24
      %v1020 = vpop.permute.xlu0 %1019
      %1021 = vrot.lane.b32.xlu0 %v248, 24
      %v1022 = vpop.permute.xlu0 %1021
      %1023 = vrot.lane.b32.xlu0 %v249, 24
      %v1024 = vpop.permute.xlu0 %1023
      %1025 = vrot.lane.b32.xlu0 %v251, 24
      %v1026 = vpop.permute.xlu0 %1025
      %1027 = vrot.lane.b32.xlu0 %v252, 24
      %v1028 = vpop.permute.xlu0 %1027
      %1029 = vrot.lane.b32.xlu0 %v254, 24
      %v1030 = vpop.permute.xlu0 %1029
      %1031 = vrot.lane.b32.xlu0 %v255, 24
      %v1032 = vpop.permute.xlu0 %1031
      %1033 = vrot.lane.b32.xlu0 %v257, 24
      %v1034 = vpop.permute.xlu0 %1033
      %1035 = vrot.lane.b32.xlu0 %v258, 24
      %v1036 = vpop.permute.xlu0 %1035
      %1037 = vrot.lane.b32.xlu0 %v260, 24
      %v1038 = vpop.permute.xlu0 %1037
      %1039 = vrot.lane.b32.xlu0 %v261, 24
      %v1040 = vpop.permute.xlu0 %1039
      %1041 = vrot.lane.b32.xlu0 %v263, 24
      %v1042 = vpop.permute.xlu0 %1041
      %1043 = vrot.lane.b32.xlu0 %v264, 24
      %v1044 = vpop.permute.xlu0 %1043
      %1045 = vrot.lane.b32.xlu0 %v266, 24
      %v1046 = vpop.permute.xlu0 %1045
      %1047 = vrot.lane.b32.xlu0 %v267, 24
      %v1048 = vpop.permute.xlu0 %1047
      %1081 = vrot.lane.b32.xlu0 %v330, 28
      %v1082 = vpop.permute.xlu0 %1081
      %1083 = vrot.lane.b32.xlu0 %v332, 28
      %v1084 = vpop.permute.xlu0 %1083
      %1085 = vrot.lane.b32.xlu0 %v335, 28
      %v1086 = vpop.permute.xlu0 %1085
      %1087 = vrot.lane.b32.xlu0 %v337, 28
      %v1088 = vpop.permute.xlu0 %1087
      %1089 = vrot.lane.b32.xlu0 %v340, 28
      %v1090 = vpop.permute.xlu0 %1089
      %1091 = vrot.lane.b32.xlu0 %v342, 28
      %v1092 = vpop.permute.xlu0 %1091
      %1093 = vrot.lane.b32.xlu0 %v345, 28
      %v1094 = vpop.permute.xlu0 %1093
      %1095 = vrot.lane.b32.xlu0 %v347, 28
      %v1096 = vpop.permute.xlu0 %1095
      %1097 = vrot.lane.b32.xlu0 %v350, 28
      %v1098 = vpop.permute.xlu0 %1097
      %1099 = vrot.lane.b32.xlu0 %v352, 28
      %v1100 = vpop.permute.xlu0 %1099
      %1101 = vrot.lane.b32.xlu0 %v355, 28
      %v1102 = vpop.permute.xlu0 %1101
      %1103 = vrot.lane.b32.xlu0 %v357, 28
      %v1104 = vpop.permute.xlu0 %1103
      %1105 = vrot.lane.b32.xlu0 %v360, 28
      %v1106 = vpop.permute.xlu0 %1105
      %1107 = vrot.lane.b32.xlu0 %v362, 28
      %v1108 = vpop.permute.xlu0 %1107
      %1109 = vrot.lane.b32.xlu0 %v365, 28
      %v1110 = vpop.permute.xlu0 %1109
      %1111 = vrot.lane.b32.xlu0 %v367, 28
      %v1112 = vpop.permute.xlu0 %1111
      %1113 = vrot.lane.b32.xlu0 %v370, 28
      %v1114 = vpop.permute.xlu0 %1113
      %1115 = vrot.lane.b32.xlu0 %v372, 28
      %v1116 = vpop.permute.xlu0 %1115
      %1117 = vrot.lane.b32.xlu0 %v375, 28
      %v1118 = vpop.permute.xlu0 %1117
      %1119 = vrot.lane.b32.xlu0 %v377, 28
      %v1120 = vpop.permute.xlu0 %1119
      %1121 = vrot.lane.b32.xlu0 %v380, 28
      %v1122 = vpop.permute.xlu0 %1121
      %1123 = vrot.lane.b32.xlu0 %v382, 28
      %v1124 = vpop.permute.xlu0 %1123
      %1125 = vrot.lane.b32.xlu0 %v385, 28
      %v1126 = vpop.permute.xlu0 %1125
      %1127 = vrot.lane.b32.xlu0 %v387, 28
      %v1128 = vpop.permute.xlu0 %1127
      %1129 = vrot.lane.b32.xlu0 %v390, 28
      %v1130 = vpop.permute.xlu0 %1129
      %1131 = vrot.lane.b32.xlu0 %v392, 28
      %v1132 = vpop.permute.xlu0 %1131
      %1133 = vrot.lane.b32.xlu0 %v395, 28
      %v1134 = vpop.permute.xlu0 %1133
      %1135 = vrot.lane.b32.xlu0 %v397, 28
      %v1136 = vpop.permute.xlu0 %1135
      %1137 = vrot.lane.b32.xlu0 %v484, 28
      %v1138 = vpop.permute.xlu0 %1137
      %1139 = vrot.lane.b32.xlu0 %v486, 28
      %v1140 = vpop.permute.xlu0 %1139
      %1141 = vrot.lane.b32.xlu0 %v497, 28
      %v1142 = vpop.permute.xlu0 %1141
      %1143 = vrot.lane.b32.xlu0 %v499, 28
      %v1144 = vpop.permute.xlu0 %1143
      %1177 = vrot.lane.b32.xlu0 %v411, 32
      %v1178 = vpop.permute.xlu0 %1177
      %1179 = vrot.lane.b32.xlu0 %v413, 32
      %v1180 = vpop.permute.xlu0 %1179
      %1181 = vrot.lane.b32.xlu0 %v416, 32
      %v1182 = vpop.permute.xlu0 %1181
      %1183 = vrot.lane.b32.xlu0 %v418, 32
      %v1184 = vpop.permute.xlu0 %1183
      %1185 = vrot.lane.b32.xlu0 %v421, 32
      %v1186 = vpop.permute.xlu0 %1185
      %1187 = vrot.lane.b32.xlu0 %v423, 32
      %v1188 = vpop.permute.xlu0 %1187
      %1189 = vrot.lane.b32.xlu0 %v426, 32
      %v1190 = vpop.permute.xlu0 %1189
      %1191 = vrot.lane.b32.xlu0 %v428, 32
      %v1192 = vpop.permute.xlu0 %1191
      %1193 = vrot.lane.b32.xlu0 %v431, 32
      %v1194 = vpop.permute.xlu0 %1193
      %1195 = vrot.lane.b32.xlu0 %v433, 32
      %v1196 = vpop.permute.xlu0 %1195
      %1197 = vrot.lane.b32.xlu0 %v436, 32
      %v1198 = vpop.permute.xlu0 %1197
      %1199 = vrot.lane.b32.xlu0 %v438, 32
      %v1200 = vpop.permute.xlu0 %1199
      %1201 = vrot.lane.b32.xlu0 %v441, 32
      %v1202 = vpop.permute.xlu0 %1201
      %1203 = vrot.lane.b32.xlu0 %v443, 32
      %v1204 = vpop.permute.xlu0 %1203
      %1205 = vrot.lane.b32.xlu0 %v446, 32
      %v1206 = vpop.permute.xlu0 %1205
      %1207 = vrot.lane.b32.xlu0 %v448, 32
      %v1208 = vpop.permute.xlu0 %1207
      %1209 = vrot.lane.b32.xlu0 %v451, 32
      %v1210 = vpop.permute.xlu0 %1209
      %1211 = vrot.lane.b32.xlu0 %v453, 32
      %v1212 = vpop.permute.xlu0 %1211
      %1213 = vrot.lane.b32.xlu0 %v456, 32
      %v1214 = vpop.permute.xlu0 %1213
      %1215 = vrot.lane.b32.xlu0 %v458, 32
      %v1216 = vpop.permute.xlu0 %1215
      %1217 = vrot.lane.b32.xlu0 %v461, 32
      %v1218 = vpop.permute.xlu0 %1217
      %1219 = vrot.lane.b32.xlu0 %v463, 32
      %v1220 = vpop.permute.xlu0 %1219
      %1221 = vrot.lane.b32.xlu0 %v466, 32
      %v1222 = vpop.permute.xlu0 %1221
      %1223 = vrot.lane.b32.xlu0 %v468, 32
      %v1224 = vpop.permute.xlu0 %1223
      %1225 = vrot.lane.b32.xlu0 %v471, 32
      %v1226 = vpop.permute.xlu0 %1225
      %1227 = vrot.lane.b32.xlu0 %v473, 32
      %v1228 = vpop.permute.xlu0 %1227
      %1229 = vrot.lane.b32.xlu0 %v476, 32
      %v1230 = vpop.permute.xlu0 %1229
      %1231 = vrot.lane.b32.xlu0 %v478, 32
      %v1232 = vpop.permute.xlu0 %1231
      %1233 = vrot.lane.b32.xlu0 %v489, 32
      %v1234 = vpop.permute.xlu0 %1233
      %1235 = vrot.lane.b32.xlu0 %v491, 32
      %v1236 = vpop.permute.xlu0 %1235
      %1237 = vrot.lane.b32.xlu0 %v502, 32
      %v1238 = vpop.permute.xlu0 %1237
      %1239 = vrot.lane.b32.xlu0 %v504, 32
      %v1240 = vpop.permute.xlu0 %1239
      %vm1273 = vcmask 31744
      %v1274 = vsel %vm1273, %v215, %v506
      %v1275 = vsel %vm1273, %v216, %v508
      %v1276 = vsel %vm1273, %v218, %v510
      %v1277 = vsel %vm1273, %v219, %v512
      %v1278 = vsel %vm1273, %v221, %v514
      %v1279 = vsel %vm1273, %v222, %v516
      %v1280 = vsel %vm1273, %v224, %v518
      %v1281 = vsel %vm1273, %v225, %v520
      %v1282 = vsel %vm1273, %v227, %v522
      %v1283 = vsel %vm1273, %v228, %v524
      %v1284 = vsel %vm1273, %v230, %v526
      %v1285 = vsel %vm1273, %v231, %v528
      %v1286 = vsel %vm1273, %v233, %v530
      %v1287 = vsel %vm1273, %v234, %v532
      %v1288 = vsel %vm1273, %v236, %v534
      %v1289 = vsel %vm1273, %v237, %v536
      %v1290 = vsel %vm1273, %v239, %v538
      %v1291 = vsel %vm1273, %v240, %v540
      %v1292 = vsel %vm1273, %v242, %v542
      %v1293 = vsel %vm1273, %v243, %v544
      %v1294 = vsel %vm1273, %v245, %v546
      %v1295 = vsel %vm1273, %v246, %v548
      %v1296 = vsel %vm1273, %v248, %v550
      %v1297 = vsel %vm1273, %v249, %v552
      %v1298 = vsel %vm1273, %v251, %v554
      %v1299 = vsel %vm1273, %v252, %v556
      %v1300 = vsel %vm1273, %v254, %v558
      %v1301 = vsel %vm1273, %v255, %v560
      %v1302 = vsel %vm1273, %v257, %v562
      %v1303 = vsel %vm1273, %v258, %v564
      %v1304 = vsel %vm1273, %v260, %v566
      %v1305 = vsel %vm1273, %v261, %v568
      %vm1306 = vcmask 64512
      %v1307 = vsel %vm1306, %v1274, %v602
      %v1308 = vsel %vm1306, %v1275, %v604
      %v1309 = vsel %vm1306, %v1276, %v606
      %v1310 = vsel %vm1306, %v1277, %v608
      %v1311 = vsel %vm1306, %v1278, %v610
      %v1312 = vsel %vm1306, %v1279, %v612
      %v1313 = vsel %vm1306, %v1280, %v614
      %v1314 = vsel %vm1306, %v1281, %v616
      %v1315 = vsel %vm1306, %v1282, %v618
      %v1316 = vsel %vm1306, %v1283, %v620
      %v1317 = vsel %vm1306, %v1284, %v622
      %v1318 = vsel %vm1306, %v1285, %v624
      %v1319 = vsel %vm1306, %v1286, %v626
      %v1320 = vsel %vm1306, %v1287, %v628
      %v1321 = vsel %vm1306, %v1288, %v630
      %v1322 = vsel %vm1306, %v1289, %v632
      %v1323 = vsel %vm1306, %v1290, %v634
      %v1324 = vsel %vm1306, %v1291, %v636
      %v1325 = vsel %vm1306, %v1292, %v638
      %v1326 = vsel %vm1306, %v1293, %v640
      %v1327 = vsel %vm1306, %v1294, %v642
      %v1328 = vsel %vm1306, %v1295, %v644
      %v1329 = vsel %vm1306, %v1296, %v646
      %v1330 = vsel %vm1306, %v1297, %v648
      %v1331 = vsel %vm1306, %v1298, %v650
      %v1332 = vsel %vm1306, %v1299, %v652
      %v1333 = vsel %vm1306, %v1300, %v654
      %v1334 = vsel %vm1306, %v1301, %v656
      %v1335 = vsel %vm1306, %v1302, %v658
      %v1336 = vsel %vm1306, %v1303, %v660
      %v1337 = vsel %vm1306, %v1304, %v662
      %v1338 = vsel %vm1306, %v1305, %v664
      %vm1339 = vcmask 97280
      %v1340 = vsel %vm1339, %v1307, %v698
      %v1341 = vsel %vm1339, %v1308, %v700
      %v1342 = vsel %vm1339, %v1309, %v702
      %v1343 = vsel %vm1339, %v1310, %v704
      %v1344 = vsel %vm1339, %v1311, %v706
      %v1345 = vsel %vm1339, %v1312, %v708
      %v1346 = vsel %vm1339, %v1313, %v710
      %v1347 = vsel %vm1339, %v1314, %v712
      %v1348 = vsel %vm1339, %v1315, %v714
      %v1349 = vsel %vm1339, %v1316, %v716
      %v1350 = vsel %vm1339, %v1317, %v718
      %v1351 = vsel %vm1339, %v1318, %v720
      %v1352 = vsel %vm1339, %v1319, %v722
      %v1353 = vsel %vm1339, %v1320, %v724
      %v1354 = vsel %vm1339, %v1321, %v726
      %v1355 = vsel %vm1339, %v1322, %v728
      %v1356 = vsel %vm1339, %v1323, %v730
      %v1357 = vsel %vm1339, %v1324, %v732
      %v1358 = vsel %vm1339, %v1325, %v734
      %v1359 = vsel %vm1339, %v1326, %v736
      %v1360 = vsel %vm1339, %v1327, %v738
      %v1361 = vsel %vm1339, %v1328, %v740
      %v1362 = vsel %vm1339, %v1329, %v742
      %v1363 = vsel %vm1339, %v1330, %v744
      %v1364 = vsel %vm1339, %v1331, %v746
      %v1365 = vsel %vm1339, %v1332, %v748
      %v1366 = vsel %vm1339, %v1333, %v750
      %v1367 = vsel %vm1339, %v1334, %v752
      %v1368 = vsel %vm1339, %v1335, %v754
      %v1369 = vsel %vm1339, %v1336, %v756
      %v1370 = vsel %vm1339, %v1337, %v758
      %v1371 = vsel %vm1339, %v1338, %v760
      %vm1372 = vcmask 130048
      %v1373 = vsel %vm1372, %v1340, %v794
      %v1374 = vsel %vm1372, %v1341, %v796
      %v1375 = vsel %vm1372, %v1342, %v798
      %v1376 = vsel %vm1372, %v1343, %v800
      %v1377 = vsel %vm1372, %v1344, %v802
      %v1378 = vsel %vm1372, %v1345, %v804
      %v1379 = vsel %vm1372, %v1346, %v806
      %v1380 = vsel %vm1372, %v1347, %v808
      %v1381 = vsel %vm1372, %v1348, %v810
      %v1382 = vsel %vm1372, %v1349, %v812
      %v1383 = vsel %vm1372, %v1350, %v814
      %v1384 = vsel %vm1372, %v1351, %v816
      %v1385 = vsel %vm1372, %v1352, %v818
      %v1386 = vsel %vm1372, %v1353, %v820
      %v1387 = vsel %vm1372, %v1354, %v822
      %v1388 = vsel %vm1372, %v1355, %v824
      %v1389 = vsel %vm1372, %v1356, %v826
      %v1390 = vsel %vm1372, %v1357, %v828
      %v1391 = vsel %vm1372, %v1358, %v830
      %v1392 = vsel %vm1372, %v1359, %v832
      %v1393 = vsel %vm1372, %v1360, %v834
      %v1394 = vsel %vm1372, %v1361, %v836
      %v1395 = vsel %vm1372, %v1362, %v838
      %v1396 = vsel %vm1372, %v1363, %v840
      %v1397 = vsel %vm1372, %v1364, %v842
      %v1398 = vsel %vm1372, %v1365, %v844
      %v1399 = vsel %vm1372, %v1366, %v846
      %v1400 = vsel %vm1372, %v1367, %v848
      %v1401 = vsel %vm1372, %v1368, %v850
      %v1402 = vsel %vm1372, %v1369, %v852
      %v1403 = vsel %vm1372, %v1370, %v854
      %v1404 = vsel %vm1372, %v1371, %v856
      %vm1405 = vcmask 162816
      %v1406 = vsel %vm1405, %v1373, %v890
      %v1407 = vsel %vm1405, %v1374, %v892
      %v1408 = vsel %vm1405, %v1375, %v894
      %v1409 = vsel %vm1405, %v1376, %v896
      %v1410 = vsel %vm1405, %v1377, %v898
      %v1411 = vsel %vm1405, %v1378, %v900
      %v1412 = vsel %vm1405, %v1379, %v902
      %v1413 = vsel %vm1405, %v1380, %v904
      %v1414 = vsel %vm1405, %v1381, %v906
      %v1415 = vsel %vm1405, %v1382, %v908
      %v1416 = vsel %vm1405, %v1383, %v910
      %v1417 = vsel %vm1405, %v1384, %v912
      %v1418 = vsel %vm1405, %v1385, %v914
      %v1419 = vsel %vm1405, %v1386, %v916
      %v1420 = vsel %vm1405, %v1387, %v918
      %v1421 = vsel %vm1405, %v1388, %v920
      %v1422 = vsel %vm1405, %v1389, %v922
      %v1423 = vsel %vm1405, %v1390, %v924
      %v1424 = vsel %vm1405, %v1391, %v926
      %v1425 = vsel %vm1405, %v1392, %v928
      %v1426 = vsel %vm1405, %v1393, %v930
      %v1427 = vsel %vm1405, %v1394, %v932
      %v1428 = vsel %vm1405, %v1395, %v934
      %v1429 = vsel %vm1405, %v1396, %v936
      %v1430 = vsel %vm1405, %v1397, %v938
      %v1431 = vsel %vm1405, %v1398, %v940
      %v1432 = vsel %vm1405, %v1399, %v942
      %v1433 = vsel %vm1405, %v1400, %v944
      %v1434 = vsel %vm1405, %v1401, %v946
      %v1435 = vsel %vm1405, %v1402, %v948
      %v1436 = vsel %vm1405, %v1403, %v950
      %v1437 = vsel %vm1405, %v1404, %v952
      %vm1438 = vcmask 195584
      %v1439 = vsel %vm1438, %v1406, %v986
      %v1440 = vsel %vm1438, %v1407, %v988
      %v1441 = vsel %vm1438, %v1408, %v990
      %v1442 = vsel %vm1438, %v1409, %v992
      %v1443 = vsel %vm1438, %v1410, %v994
      %v1444 = vsel %vm1438, %v1411, %v996
      %v1445 = vsel %vm1438, %v1412, %v998
      %v1446 = vsel %vm1438, %v1413, %v1000
      %v1447 = vsel %vm1438, %v1414, %v1002
      %v1448 = vsel %vm1438, %v1415, %v1004
      %v1449 = vsel %vm1438, %v1416, %v1006
      %v1450 = vsel %vm1438, %v1417, %v1008
      %v1451 = vsel %vm1438, %v1418, %v1010
      %v1452 = vsel %vm1438, %v1419, %v1012
      %v1453 = vsel %vm1438, %v1420, %v1014
      %v1454 = vsel %vm1438, %v1421, %v1016
      %v1455 = vsel %vm1438, %v1422, %v1018
      %v1456 = vsel %vm1438, %v1423, %v1020
      %v1457 = vsel %vm1438, %v1424, %v1022
      %v1458 = vsel %vm1438, %v1425, %v1024
      %v1459 = vsel %vm1438, %v1426, %v1026
      %v1460 = vsel %vm1438, %v1427, %v1028
      %v1461 = vsel %vm1438, %v1428, %v1030
      %v1462 = vsel %vm1438, %v1429, %v1032
      %v1463 = vsel %vm1438, %v1430, %v1034
      %v1464 = vsel %vm1438, %v1431, %v1036
      %v1465 = vsel %vm1438, %v1432, %v1038
      %v1466 = vsel %vm1438, %v1433, %v1040
      %v1467 = vsel %vm1438, %v1434, %v1042
      %v1468 = vsel %vm1438, %v1435, %v1044
      %v1469 = vsel %vm1438, %v1436, %v1046
      %v1470 = vsel %vm1438, %v1437, %v1048
      %vm1471 = vcmask 228352
      %v1472 = vsel %vm1471, %v1439, %v1082
      %v1473 = vsel %vm1471, %v1440, %v1084
      %v1474 = vsel %vm1471, %v1441, %v1086
      %v1475 = vsel %vm1471, %v1442, %v1088
      %v1476 = vsel %vm1471, %v1443, %v1090
      %v1477 = vsel %vm1471, %v1444, %v1092
      %v1478 = vsel %vm1471, %v1445, %v1094
      %v1479 = vsel %vm1471, %v1446, %v1096
      %v1480 = vsel %vm1471, %v1447, %v1098
      %v1481 = vsel %vm1471, %v1448, %v1100
      %v1482 = vsel %vm1471, %v1449, %v1102
      %v1483 = vsel %vm1471, %v1450, %v1104
      %v1484 = vsel %vm1471, %v1451, %v1106
      %v1485 = vsel %vm1471, %v1452, %v1108
      %v1486 = vsel %vm1471, %v1453, %v1110
      %v1487 = vsel %vm1471, %v1454, %v1112
      %v1488 = vsel %vm1471, %v1455, %v1114
      %v1489 = vsel %vm1471, %v1456, %v1116
      %v1490 = vsel %vm1471, %v1457, %v1118
      %v1491 = vsel %vm1471, %v1458, %v1120
      %v1492 = vsel %vm1471, %v1459, %v1122
      %v1493 = vsel %vm1471, %v1460, %v1124
      %v1494 = vsel %vm1471, %v1461, %v1126
      %v1495 = vsel %vm1471, %v1462, %v1128
      %v1496 = vsel %vm1471, %v1463, %v1130
      %v1497 = vsel %vm1471, %v1464, %v1132
      %v1498 = vsel %vm1471, %v1465, %v1134
      %v1499 = vsel %vm1471, %v1466, %v1136
      %v1500 = vsel %vm1471, %v1467, %v1138
      %v1501 = vsel %vm1471, %v1468, %v1140
      %v1502 = vsel %vm1471, %v1469, %v1142
      %v1503 = vsel %vm1471, %v1470, %v1144
      %vm1504 = vcmask 261120
      %v1505 = vsel %vm1504, %v1472, %v1178
      %v1506 = vsel %vm1504, %v1473, %v1180
      %v1507 = vsel %vm1504, %v1474, %v1182
      %v1508 = vsel %vm1504, %v1475, %v1184
      %v1509 = vsel %vm1504, %v1476, %v1186
      %v1510 = vsel %vm1504, %v1477, %v1188
      %v1511 = vsel %vm1504, %v1478, %v1190
      %v1512 = vsel %vm1504, %v1479, %v1192
      %v1513 = vsel %vm1504, %v1480, %v1194
      %v1514 = vsel %vm1504, %v1481, %v1196
      %v1515 = vsel %vm1504, %v1482, %v1198
      %v1516 = vsel %vm1504, %v1483, %v1200
      %v1517 = vsel %vm1504, %v1484, %v1202
      %v1518 = vsel %vm1504, %v1485, %v1204
      %v1519 = vsel %vm1504, %v1486, %v1206
      %v1520 = vsel %vm1504, %v1487, %v1208
      %v1521 = vsel %vm1504, %v1488, %v1210
      %v1522 = vsel %vm1504, %v1489, %v1212
      %v1523 = vsel %vm1504, %v1490, %v1214
      %v1524 = vsel %vm1504, %v1491, %v1216
      %v1525 = vsel %vm1504, %v1492, %v1218
      %v1526 = vsel %vm1504, %v1493, %v1220
      %v1527 = vsel %vm1504, %v1494, %v1222
      %v1528 = vsel %vm1504, %v1495, %v1224
      %v1529 = vsel %vm1504, %v1496, %v1226
      %v1530 = vsel %vm1504, %v1497, %v1228
      %v1531 = vsel %vm1504, %v1498, %v1230
      %v1532 = vsel %vm1504, %v1499, %v1232
      %v1533 = vsel %vm1504, %v1500, %v1234
      %v1534 = vsel %vm1504, %v1501, %v1236
      %v1535 = vsel %vm1504, %v1502, %v1238
      %v1536 = vsel %vm1504, %v1503, %v1240
      %v1537 = vld [vmem:[%s1] sm:$0xff]
      %v1538 = vld [vmem:[%s1 + $0x8] sm:$0xff]
      %v1539 = vld [vmem:[%s1 + $0x10] sm:$0xff]
      %v1540 = vld [vmem:[%s1 + $0x18] sm:$0xff]
      %v1541 = vld [vmem:[%s1 + $0x20] sm:$0xf]
      %vm1542 = vcmask 293888
      %v1544 = vsel %vm1542, %v1505, 0
      %v1547 = vsel %vm1542, %v1506, 0
      %v1550 = vsel %vm1542, %v1507, 0
      %v1553 = vsel %vm1542, %v1508, 0
      %v1556 = vsel %vm1542, %v1509, 0
      %v1559 = vsel %vm1542, %v1510, 0
      %v1562 = vsel %vm1542, %v1511, 0
      %v1565 = vsel %vm1542, %v1512, 0
      %v1568 = vsel %vm1542, %v1513, 0
      %v1571 = vsel %vm1542, %v1514, 0
      %v1574 = vsel %vm1542, %v1515, 0
      %v1577 = vsel %vm1542, %v1516, 0
      %v1580 = vsel %vm1542, %v1517, 0
      %v1583 = vsel %vm1542, %v1518, 0
      %v1586 = vsel %vm1542, %v1519, 0
      %v1589 = vsel %vm1542, %v1520, 0
      %v1592 = vsel %vm1542, %v1521, 0
      %v1595 = vsel %vm1542, %v1522, 0
      %v1598 = vsel %vm1542, %v1523, 0
      %v1601 = vsel %vm1542, %v1524, 0
      %v1604 = vsel %vm1542, %v1525, 0
      %v1607 = vsel %vm1542, %v1526, 0
      %v1610 = vsel %vm1542, %v1527, 0
      %v1613 = vsel %vm1542, %v1528, 0
      %v1616 = vsel %vm1542, %v1529, 0
      %v1619 = vsel %vm1542, %v1530, 0
      %v1622 = vsel %vm1542, %v1531, 0
      %v1625 = vsel %vm1542, %v1532, 0
      %v1628 = vsel %vm1542, %v1533, 0
      %v1631 = vsel %vm1542, %v1534, 0
      %v1634 = vsel %vm1542, %v1535, 0
      %v1637 = vsel %vm1542, %v1536, 0
      %vm1639 = vcmask 1043456
      %v1641 = vsel %vm1639, %v1541, 0
      %1643 = vmatprep.subr.mxu0 0.0
      %1644 = vmatpush1.msra.mxu0 %v1537
      %1645 = vmatprep.subr.mxu0 0.0
      %1646 = vmatpush1.msra.mxu0 %v1538
      %1647 = vmatprep.subr.mxu0 0.0
      %1648 = vmatpush1.msra.mxu0 %v1539
      %1649 = vmatprep.subr.mxu0 0.0
      %1650 = vmatpush1.msra.mxu0 %v1540
      %1651 = vmatprep.subr.mxu0 0.0
      %1652 = vmatpush1.msra.mxu0 %v1641
      %1653 = vmatprep.subr.mxu0 0.0
      %1654 = vmatpush1.msra.mxu0 0.0
      %1655 = vmatprep.subr.mxu0 0.0
      %1656 = vmatpush1.msra.mxu0 0.0
      %1657 = vmatprep.subr.mxu0 0.0
      %1658 = vmatpush1.msra.mxu0 0.0
      %1659 = vmatprep.subr.mxu0 0.0
      %1660 = vmatpush1.msra.mxu0 0.0
      %1661 = vmatprep.subr.mxu0 0.0
      %1662 = vmatpush1.msra.mxu0 0.0
      %1663 = vmatprep.subr.mxu0 0.0
      %1664 = vmatpush1.msra.mxu0 0.0
      %1665 = vmatprep.subr.mxu0 0.0
      %1666 = vmatpush1.msra.mxu0 0.0
      %1667 = vmatprep.subr.mxu0 0.0
      %1668 = vmatpush1.msra.mxu0 0.0
      %1669 = vmatprep.subr.mxu0 0.0
      %1670 = vmatpush1.msra.mxu0 0.0
      %1671 = vmatprep.subr.mxu0 0.0
      %1672 = vmatpush1.msra.mxu0 0.0
      %1673 = vmatprep.subr.mxu0 0.0
      %1674 = vmatpush1.msra.mxu0 0.0
      %1675 = vmatprep.subr.mxu0 0.0
      %1676 = vmatpush1.msra.mxu0 0.0
      %1677 = vmatprep.subr.mxu0 0.0
      %1678 = vmatpush1.msra.mxu0 0.0
      %1679 = vmatprep.subr.mxu0 0.0
      %1680 = vmatpush1.msra.mxu0 0.0
      %1681 = vmatprep.subr.mxu0 0.0
      %1682 = vmatpush1.msra.mxu0 0.0
      %1683 = vmatprep.subr.mxu0 0.0
      %1684 = vmatpush1.msra.mxu0 0.0
      %1685 = vmatprep.subr.mxu0 0.0
      %1686 = vmatpush1.msra.mxu0 0.0
      %1687 = vmatprep.subr.mxu0 0.0
      %1688 = vmatpush1.msra.mxu0 0.0
      %1689 = vmatprep.subr.mxu0 0.0
      %1690 = vmatpush1.msra.mxu0 0.0
      %1691 = vmatprep.subr.mxu0 0.0
      %1692 = vmatpush1.msra.mxu0 0.0
      %1693 = vmatprep.subr.mxu0 0.0
      %1694 = vmatpush1.msra.mxu0 0.0
      %1695 = vmatprep.subr.mxu0 0.0
      %1696 = vmatpush1.msra.mxu0 0.0
      %1697 = vmatprep.subr.mxu0 0.0
      %1698 = vmatpush1.msra.mxu0 0.0
      %1699 = vmatprep.subr.mxu0 0.0
      %1700 = vmatpush1.msra.mxu0 0.0
      %1701 = vmatprep.subr.mxu0 0.0
      %1702 = vmatpush1.msra.mxu0 0.0
      %1703 = vmatprep.subr.mxu0 0.0
      %1704 = vmatpush1.msra.mxu0 0.0
      %1705 = vmatprep.subr.mxu0 0.0
      %1706 = vmatpush1.msra.mxu0 0.0
      %1707 = vmatprep.mubr.f32.mxu0 0.0
      %1708 = vmatmul.mubr.f32.gmra.mrb[0].mxu0 %v1544
      %v1709 = vpop.f32.mrb[0].mxu0
      %v1710 = vadd.f32 0.0, %v1709
      %v1711 = vpop.f32.mrb[0].mxu0
      %1712 = vmatprep.mubr.f32.mxu0 0.0
      %1713 = vmatmul.mubr.f32.gmra.mrb[0].mxu0 %v1547
      %v1714 = vpop.f32.mrb[0].mxu0
      %v1715 = vadd.f32 0.0, %v1714
      %v1716 = vpop.f32.mrb[0].mxu0
      %1717 = vmatprep.mubr.f32.mxu0 0.0
      %1718 = vmatmul.mubr.f32.gmra.mrb[0].mxu0 %v1550
      %v1719 = vpop.f32.mrb[0].mxu0
      %v1720 = vadd.f32 0.0, %v1719
      %v1721 = vpop.f32.mrb[0].mxu0
      %1722 = vmatprep.mubr.f32.mxu0 0.0
      %1723 = vmatmul.mubr.f32.gmra.mrb[0].mxu0 %v1553
      %v1724 = vpop.f32.mrb[0].mxu0
      %v1725 = vadd.f32 0.0, %v1724
      %v1726 = vpop.f32.mrb[0].mxu0
      %1727 = vmatprep.mubr.f32.mxu0 0.0
      %1728 = vmatmul.mubr.f32.gmra.mrb[0].mxu0 %v1556
      %v1729 = vpop.f32.mrb[0].mxu0
      %v1730 = vadd.f32 0.0, %v1729
      %v1731 = vpop.f32.mrb[0].mxu0
      %1732 = vmatprep.mubr.f32.mxu0 0.0
      %1733 = vmatmul.mubr.f32.gmra.mrb[0].mxu0 %v1559
      %v1734 = vpop.f32.mrb[0].mxu0
      %v1735 = vadd.f32 0.0, %v1734
      %v1736 = vpop.f32.mrb[0].mxu0
      %1737 = vmatprep.mubr.f32.mxu0 0.0
      %1738 = vmatmul.mubr.f32.gmra.mrb[0].mxu0 %v1562
      %v1739 = vpop.f32.mrb[0].mxu0
      %v1740 = vadd.f32 0.0, %v1739
      %v1741 = vpop.f32.mrb[0].mxu0
      %1742 = vmatprep.mubr.f32.mxu0 0.0
      %1743 = vmatmul.mubr.f32.gmra.mrb[0].mxu0 %v1565
      %v1744 = vpop.f32.mrb[0].mxu0
      %v1745 = vadd.f32 0.0, %v1744
      %v1746 = vpop.f32.mrb[0].mxu0
      %1747 = vmatprep.mubr.f32.mxu0 0.0
      %1748 = vmatmul.mubr.f32.gmra.mrb[0].mxu0 %v1568
      %v1749 = vpop.f32.mrb[0].mxu0
      %v1750 = vadd.f32 0.0, %v1749
      %v1751 = vpop.f32.mrb[0].mxu0
      %1752 = vmatprep.mubr.f32.mxu0 0.0
      %1753 = vmatmul.mubr.f32.gmra.mrb[0].mxu0 %v1571
      %v1754 = vpop.f32.mrb[0].mxu0
      %v1755 = vadd.f32 0.0, %v1754
      %v1756 = vpop.f32.mrb[0].mxu0
      %1757 = vmatprep.mubr.f32.mxu0 0.0
      %1758 = vmatmul.mubr.f32.gmra.mrb[0].mxu0 %v1574
      %v1759 = vpop.f32.mrb[0].mxu0
      %v1760 = vadd.f32 0.0, %v1759
      %v1761 = vpop.f32.mrb[0].mxu0
      %1762 = vmatprep.mubr.f32.mxu0 0.0
      %1763 = vmatmul.mubr.f32.gmra.mrb[0].mxu0 %v1577
      %v1764 = vpop.f32.mrb[0].mxu0
      %v1765 = vadd.f32 0.0, %v1764
      %v1766 = vpop.f32.mrb[0].mxu0
      %1767 = vmatprep.mubr.f32.mxu0 0.0
      %1768 = vmatmul.mubr.f32.gmra.mrb[0].mxu0 %v1580
      %v1769 = vpop.f32.mrb[0].mxu0
      %v1770 = vadd.f32 0.0, %v1769
      %v1771 = vpop.f32.mrb[0].mxu0
      %1772 = vmatprep.mubr.f32.mxu0 0.0
      %1773 = vmatmul.mubr.f32.gmra.mrb[0].mxu0 %v1583
      %v1774 = vpop.f32.mrb[0].mxu0
      %v1775 = vadd.f32 0.0, %v1774
      %v1776 = vpop.f32.mrb[0].mxu0
      %1777 = vmatprep.mubr.f32.mxu0 0.0
      %1778 = vmatmul.mubr.f32.gmra.mrb[0].mxu0 %v1586
      %v1779 = vpop.f32.mrb[0].mxu0
      %v1780 = vadd.f32 0.0, %v1779
      %v1781 = vpop.f32.mrb[0].mxu0
      %1782 = vmatprep.mubr.f32.mxu0 0.0
      %1783 = vmatmul.mubr.f32.gmra.mrb[0].mxu0 %v1589
      %v1784 = vpop.f32.mrb[0].mxu0
      %v1785 = vadd.f32 0.0, %v1784
      %v1786 = vpop.f32.mrb[0].mxu0
      %1787 = vmatprep.mubr.f32.mxu0 0.0
      %1788 = vmatmul.mubr.f32.gmra.mrb[0].mxu0 %v1592
      %v1789 = vpop.f32.mrb[0].mxu0
      %v1790 = vadd.f32 0.0, %v1789
      %v1791 = vpop.f32.mrb[0].mxu0
      %1792 = vmatprep.mubr.f32.mxu0 0.0
      %1793 = vmatmul.mubr.f32.gmra.mrb[0].mxu0 %v1595
      %v1794 = vpop.f32.mrb[0].mxu0
      %v1795 = vadd.f32 0.0, %v1794
      %v1796 = vpop.f32.mrb[0].mxu0
      %1797 = vmatprep.mubr.f32.mxu0 0.0
      %1798 = vmatmul.mubr.f32.gmra.mrb[0].mxu0 %v1598
      %v1799 = vpop.f32.mrb[0].mxu0
      %v1800 = vadd.f32 0.0, %v1799
      %v1801 = vpop.f32.mrb[0].mxu0
      %1802 = vmatprep.mubr.f32.mxu0 0.0
      %1803 = vmatmul.mubr.f32.gmra.mrb[0].mxu0 %v1601
      %v1804 = vpop.f32.mrb[0].mxu0
      %v1805 = vadd.f32 0.0, %v1804
      %v1806 = vpop.f32.mrb[0].mxu0
      %1807 = vmatprep.mubr.f32.mxu0 0.0
      %1808 = vmatmul.mubr.f32.gmra.mrb[0].mxu0 %v1604
      %v1809 = vpop.f32.mrb[0].mxu0
      %v1810 = vadd.f32 0.0, %v1809
      %v1811 = vpop.f32.mrb[0].mxu0
      %1812 = vmatprep.mubr.f32.mxu0 0.0
      %1813 = vmatmul.mubr.f32.gmra.mrb[0].mxu0 %v1607
      %v1814 = vpop.f32.mrb[0].mxu0
      %v1815 = vadd.f32 0.0, %v1814
      %v1816 = vpop.f32.mrb[0].mxu0
      %1817 = vmatprep.mubr.f32.mxu0 0.0
      %1818 = vmatmul.mubr.f32.gmra.mrb[0].mxu0 %v1610
      %v1819 = vpop.f32.mrb[0].mxu0
      %v1820 = vadd.f32 0.0, %v1819
      %v1821 = vpop.f32.mrb[0].mxu0
      %1822 = vmatprep.mubr.f32.mxu0 0.0
      %1823 = vmatmul.mubr.f32.gmra.mrb[0].mxu0 %v1613
      %v1824 = vpop.f32.mrb[0].mxu0
      %v1825 = vadd.f32 0.0, %v1824
      %v1826 = vpop.f32.mrb[0].mxu0
      %1827 = vmatprep.mubr.f32.mxu0 0.0
      %1828 = vmatmul.mubr.f32.gmra.mrb[0].mxu0 %v1616
      %v1829 = vpop.f32.mrb[0].mxu0
      %v1830 = vadd.f32 0.0, %v1829
      %v1831 = vpop.f32.mrb[0].mxu0
      %1832 = vmatprep.mubr.f32.mxu0 0.0
      %1833 = vmatmul.mubr.f32.gmra.mrb[0].mxu0 %v1619
      %v1834 = vpop.f32.mrb[0].mxu0
      %v1835 = vadd.f32 0.0, %v1834
      %v1836 = vpop.f32.mrb[0].mxu0
      %1837 = vmatprep.mubr.f32.mxu0 0.0
      %1838 = vmatmul.mubr.f32.gmra.mrb[0].mxu0 %v1622
      %v1839 = vpop.f32.mrb[0].mxu0
      %v1840 = vadd.f32 0.0, %v1839
      %v1841 = vpop.f32.mrb[0].mxu0
      %1842 = vmatprep.mubr.f32.mxu0 0.0
      %1843 = vmatmul.mubr.f32.gmra.mrb[0].mxu0 %v1625
      %v1844 = vpop.f32.mrb[0].mxu0
      %v1845 = vadd.f32 0.0, %v1844
      %v1846 = vpop.f32.mrb[0].mxu0
      %1847 = vmatprep.mubr.f32.mxu0 0.0
      %1848 = vmatmul.mubr.f32.gmra.mrb[0].mxu0 %v1628
      %v1849 = vpop.f32.mrb[0].mxu0
      %v1850 = vadd.f32 0.0, %v1849
      %v1851 = vpop.f32.mrb[0].mxu0
      %1852 = vmatprep.mubr.f32.mxu0 0.0
      %1853 = vmatmul.mubr.f32.gmra.mrb[0].mxu0 %v1631
      %v1854 = vpop.f32.mrb[0].mxu0
      %v1855 = vadd.f32 0.0, %v1854
      %v1856 = vpop.f32.mrb[0].mxu0
      %1857 = vmatprep.mubr.f32.mxu0 0.0
      %1858 = vmatmul.mubr.f32.gmra.mrb[0].mxu0 %v1634
      %v1859 = vpop.f32.mrb[0].mxu0
      %v1860 = vadd.f32 0.0, %v1859
      %v1861 = vpop.f32.mrb[0].mxu0
      %1862 = vmatprep.mubr.f32.mxu0 0.0
      %1863 = vmatmul.mubr.f32.gmra.mrb[0].mxu0 %v1637
      %v1864 = vpop.f32.mrb[0].mxu0
      %v1865 = vadd.f32 0.0, %v1864
      %v1866 = vpop.f32.mrb[0].mxu0
      %1867 = vdwg.mxu0
      %p1868 = scmp.eq.s32.totalorder %s19, 0
      %p1869 = scmp.eq.s32.totalorder %s20, 0
      %p1870 = pnand %p1868, %p1869
      %p1871 = pneg %p1870
      // Predicated region
      $region37: #{skeleton_block_forward.1} parent=35 // pred_check
        _
      $region38: #{skeleton_block_forward.1} parent=35 // pred_check_branch
        %1873 = sbr.rel (%p1870) target = $region40
      $region39: #{skeleton_block_forward.1} parent=35 // pred_region
        %vm1874 = vcmask 57344
        %1875 = vst.msk [vmem:[#allocation2] sm:$0x1] %vm1874, 0.0
        %1876 = vst.msk [vmem:[#allocation3] sm:$0x1] %vm1874, 0.0
      $region40: #{skeleton_block_forward.1} parent=35 // pred_fallthru
        _
      // Predicated region
      $region41: #{skeleton_block_forward.1} parent=35 // pred_check
        %p1877 = pneg %p1868
      $region42: #{skeleton_block_forward.1} parent=35 // pred_check_branch
        %1879 = sbr.rel (%p1877) target = $region44
      $region43: #{skeleton_block_forward.1} parent=35 // pred_region
        %v1880 = vld [vmem:[#allocation2] sm:$0x1]
        %v1881 = vsel %vm1306, %v1710, 0.0
        %v1882 = vsel %vm1306, %v1715, 0.0
        %v1883 = vadd.f32 %v1881, %v1882
        %v1884 = vsel %vm1306, %v1720, 0.0
        %v1885 = vadd.f32 %v1883, %v1884
        %v1886 = vsel %vm1306, %v1725, 0.0
        %v1887 = vadd.f32 %v1885, %v1886
        %v1888 = vsel %vm1306, %v1730, 0.0
        %v1889 = vadd.f32 %v1887, %v1888
        %v1890 = vsel %vm1306, %v1735, 0.0
        %v1891 = vadd.f32 %v1889, %v1890
        %v1892 = vsel %vm1306, %v1740, 0.0
        %v1893 = vadd.f32 %v1891, %v1892
        %v1894 = vsel %vm1306, %v1745, 0.0
        %v1895 = vadd.f32 %v1893, %v1894
        %v1896 = vsel %vm1306, %v1750, 0.0
        %v1897 = vadd.f32 %v1895, %v1896
        %v1898 = vsel %vm1306, %v1755, 0.0
        %v1899 = vadd.f32 %v1897, %v1898
        %v1900 = vsel %vm1306, %v1760, 0.0
        %v1901 = vadd.f32 %v1899, %v1900
        %v1902 = vsel %vm1306, %v1765, 0.0
        %v1903 = vadd.f32 %v1901, %v1902
        %v1904 = vsel %vm1306, %v1770, 0.0
        %v1905 = vadd.f32 %v1903, %v1904
        %v1906 = vsel %vm1306, %v1775, 0.0
        %v1907 = vadd.f32 %v1905, %v1906
        %v1908 = vsel %vm1306, %v1780, 0.0
        %v1909 = vadd.f32 %v1907, %v1908
        %v1910 = vsel %vm1306, %v1785, 0.0
        %v1911 = vadd.f32 %v1909, %v1910
        %v1912 = vsel %vm1306, %v1790, 0.0
        %v1913 = vadd.f32 %v1911, %v1912
        %v1914 = vsel %vm1306, %v1795, 0.0
        %v1915 = vadd.f32 %v1913, %v1914
        %v1916 = vsel %vm1306, %v1800, 0.0
        %v1917 = vadd.f32 %v1915, %v1916
        %v1918 = vsel %vm1306, %v1805, 0.0
        %v1919 = vadd.f32 %v1917, %v1918
        %v1920 = vsel %vm1306, %v1810, 0.0
        %v1921 = vadd.f32 %v1919, %v1920
        %v1922 = vsel %vm1306, %v1815, 0.0
        %v1923 = vadd.f32 %v1921, %v1922
        %v1924 = vsel %vm1306, %v1820, 0.0
        %v1925 = vadd.f32 %v1923, %v1924
        %v1926 = vsel %vm1306, %v1825, 0.0
        %v1927 = vadd.f32 %v1925, %v1926
        %v1928 = vsel %vm1306, %v1830, 0.0
        %v1929 = vadd.f32 %v1927, %v1928
        %v1930 = vsel %vm1306, %v1835, 0.0
        %v1931 = vadd.f32 %v1929, %v1930
        %v1932 = vsel %vm1306, %v1840, 0.0
        %v1933 = vadd.f32 %v1931, %v1932
        %v1934 = vsel %vm1306, %v1845, 0.0
        %v1935 = vadd.f32 %v1933, %v1934
        %v1936 = vsel %vm1306, %v1850, 0.0
        %v1937 = vadd.f32 %v1935, %v1936
        %v1938 = vsel %vm1306, %v1855, 0.0
        %v1939 = vadd.f32 %v1937, %v1938
        %v1940 = vsel %vm1306, %v1860, 0.0
        %v1941 = vadd.f32 %v1939, %v1940
        %v1942 = vsel %vm1306, %v1865, 0.0
        %v1943 = vadd.f32 %v1941, %v1942
        %v1944 = vrot.slane %v1943, 4
        %v1945 = vadd.f32 %v1943, %v1944
        %v1946 = vrot.slane %v1945, 2
        %v1947 = vadd.f32 %v1945, %v1946
        %v1948 = vrot.slane %v1947, 1
        %v1949 = vadd.f32 %v1947, %v1948
        %v1950 = vadd.f32 %v1880, %v1949
        %vm1951 = vcmask 57344
        %1952 = vst.msk [vmem:[#allocation2] sm:$0x1] %vm1951, %v1950
        %v1953 = vld [vmem:[#allocation3] sm:$0x1]
        %v1954 = vmul.f32 %v1710, %v1710
        %v1955 = vmul.f32 %v1715, %v1715
        %v1956 = vmul.f32 %v1720, %v1720
        %v1957 = vmul.f32 %v1725, %v1725
        %v1958 = vmul.f32 %v1730, %v1730
        %v1959 = vmul.f32 %v1735, %v1735
        %v1960 = vmul.f32 %v1740, %v1740
        %v1961 = vmul.f32 %v1745, %v1745
        %v1962 = vmul.f32 %v1750, %v1750
        %v1963 = vmul.f32 %v1755, %v1755
        %v1964 = vmul.f32 %v1760, %v1760
        %v1965 = vmul.f32 %v1765, %v1765
        %v1966 = vmul.f32 %v1770, %v1770
        %v1967 = vmul.f32 %v1775, %v1775
        %v1968 = vmul.f32 %v1780, %v1780
        %v1969 = vmul.f32 %v1785, %v1785
        %v1970 = vmul.f32 %v1790, %v1790
        %v1971 = vmul.f32 %v1795, %v1795
        %v1972 = vmul.f32 %v1800, %v1800
        %v1973 = vmul.f32 %v1805, %v1805
        %v1974 = vmul.f32 %v1810, %v1810
        %v1975 = vmul.f32 %v1815, %v1815
        %v1976 = vmul.f32 %v1820, %v1820
        %v1977 = vmul.f32 %v1825, %v1825
        %v1978 = vmul.f32 %v1830, %v1830
        %v1979 = vmul.f32 %v1835, %v1835
        %v1980 = vmul.f32 %v1840, %v1840
        %v1981 = vmul.f32 %v1845, %v1845
        %v1982 = vmul.f32 %v1850, %v1850
        %v1983 = vmul.f32 %v1855, %v1855
        %v1984 = vmul.f32 %v1860, %v1860
        %v1985 = vmul.f32 %v1865, %v1865
        %v1986 = vsel %vm1306, %v1954, 0.0
        %v1987 = vsel %vm1306, %v1955, 0.0
        %v1988 = vadd.f32 %v1986, %v1987
        %v1989 = vsel %vm1306, %v1956, 0.0
        %v1990 = vadd.f32 %v1988, %v1989
        %v1991 = vsel %vm1306, %v1957, 0.0
        %v1992 = vadd.f32 %v1990, %v1991
        %v1993 = vsel %vm1306, %v1958, 0.0
        %v1994 = vadd.f32 %v1992, %v1993
        %v1995 = vsel %vm1306, %v1959, 0.0
        %v1996 = vadd.f32 %v1994, %v1995
        %v1997 = vsel %vm1306, %v1960, 0.0
        %v1998 = vadd.f32 %v1996, %v1997
        %v1999 = vsel %vm1306, %v1961, 0.0
        %v2000 = vadd.f32 %v1998, %v1999
        %v2001 = vsel %vm1306, %v1962, 0.0
        %v2002 = vadd.f32 %v2000, %v2001
        %v2003 = vsel %vm1306, %v1963, 0.0
        %v2004 = vadd.f32 %v2002, %v2003
        %v2005 = vsel %vm1306, %v1964, 0.0
        %v2006 = vadd.f32 %v2004, %v2005
        %v2007 = vsel %vm1306, %v1965, 0.0
        %v2008 = vadd.f32 %v2006, %v2007
        %v2009 = vsel %vm1306, %v1966, 0.0
        %v2010 = vadd.f32 %v2008, %v2009
        %v2011 = vsel %vm1306, %v1967, 0.0
        %v2012 = vadd.f32 %v2010, %v2011
        %v2013 = vsel %vm1306, %v1968, 0.0
        %v2014 = vadd.f32 %v2012, %v2013
        %v2015 = vsel %vm1306, %v1969, 0.0
        %v2016 = vadd.f32 %v2014, %v2015
        %v2017 = vsel %vm1306, %v1970, 0.0
        %v2018 = vadd.f32 %v2016, %v2017
        %v2019 = vsel %vm1306, %v1971, 0.0
        %v2020 = vadd.f32 %v2018, %v2019
        %v2021 = vsel %vm1306, %v1972, 0.0
        %v2022 = vadd.f32 %v2020, %v2021
        %v2023 = vsel %vm1306, %v1973, 0.0
        %v2024 = vadd.f32 %v2022, %v2023
        %v2025 = vsel %vm1306, %v1974, 0.0
        %v2026 = vadd.f32 %v2024, %v2025
        %v2027 = vsel %vm1306, %v1975, 0.0
        %v2028 = vadd.f32 %v2026, %v2027
        %v2029 = vsel %vm1306, %v1976, 0.0
        %v2030 = vadd.f32 %v2028, %v2029
        %v2031 = vsel %vm1306, %v1977, 0.0
        %v2032 = vadd.f32 %v2030, %v2031
        %v2033 = vsel %vm1306, %v1978, 0.0
        %v2034 = vadd.f32 %v2032, %v2033
        %v2035 = vsel %vm1306, %v1979, 0.0
        %v2036 = vadd.f32 %v2034, %v2035
        %v2037 = vsel %vm1306, %v1980, 0.0
        %v2038 = vadd.f32 %v2036, %v2037
        %v2039 = vsel %vm1306, %v1981, 0.0
        %v2040 = vadd.f32 %v2038, %v2039
        %v2041 = vsel %vm1306, %v1982, 0.0
        %v2042 = vadd.f32 %v2040, %v2041
        %v2043 = vsel %vm1306, %v1983, 0.0
        %v2044 = vadd.f32 %v2042, %v2043
        %v2045 = vsel %vm1306, %v1984, 0.0
        %v2046 = vadd.f32 %v2044, %v2045
        %v2047 = vsel %vm1306, %v1985, 0.0
        %v2048 = vadd.f32 %v2046, %v2047
        %v2049 = vrot.slane %v2048, 4
        %v2050 = vadd.f32 %v2048, %v2049
        %v2051 = vrot.slane %v2050, 2
        %v2052 = vadd.f32 %v2050, %v2051
        %v2053 = vrot.slane %v2052, 1
        %v2054 = vadd.f32 %v2052, %v2053
        %v2055 = vadd.f32 %v1953, %v2054
        %2056 = vst.msk [vmem:[#allocation3] sm:$0x1] %vm1951, %v2055
      $region44: #{skeleton_block_forward.1} parent=35 // pred_fallthru
        _
      %p2057 = scmp.eq.s32.totalorder %s19, 1
      %p2058 = pnand %p2057, %p1869
      %p2059 = pneg %p2058
      // Predicated region
      $region45: #{skeleton_block_forward.1} parent=35 // pred_check
        _
      $region46: #{skeleton_block_forward.1} parent=35 // pred_check_branch
        %2061 = sbr.rel (%p2058) target = $region48
      $region47: #{skeleton_block_forward.1} parent=35 // pred_region
        %v2062 = vld [vmem:[#allocation2] sm:$0x1]
        %v2063 = vmul.f32 %v2062, 0.001953125
        %v2064 = vld [vmem:[#allocation3] sm:$0x1]
        %v2065 = vmul.f32 %v2064, 0.001953125
        %v2066 = vmul.f32 %v2063, %v2063
        %v2067 = vsub.f32 %v2065, %v2066
        %v2068 = vmax.f32 %v2067, 0.0
        %v2069 = vld [vmem:[%s2] sm:$0x1]
        %v2070 = vadd.f32 %v2068, 1e-05
        %v2071 = vrsqrt.pop %v2070
        %v2072 = vmul.f32 %v2069, %v2071
        %vm2073 = vcmask 57344
        %2074 = vst.msk [vmem:[#allocation4] sm:$0x1] %vm2073, %v2072
        %v2075 = vld [vmem:[%s3] sm:$0x1]
        %v2076 = vmul.f32 %v2063, %v2072
        %v2077 = vsub.f32 %v2075, %v2076
        %2078 = vst.msk [vmem:[#allocation5] sm:$0x1] %vm2073, %v2077
      $region48: #{skeleton_block_forward.1} parent=35 // pred_fallthru
        _
      // Predicated region
      $region49: #{skeleton_block_forward.1} parent=35 // pred_check
        %p2079 = pneg %p2057
      $region50: #{skeleton_block_forward.1} parent=35 // pred_check_branch
        %2081 = sbr.rel (%p2079) target = $region52
      $region51: #{skeleton_block_forward.1} parent=35 // pred_region
        %v2082 = vld [vmem:[#allocation4] sm:$0x1]
        %v2084 = vlaneseq
        %v2085 = vshrl.u32 %v2084, 7
        %v2086 = vsub.s32 0, %v2085
        %v2087 = vrot.slane %v2082, %v2086
        %v2089 = vmul.f32 %v1710, %v2087
        %v2090 = vmul.f32 %v1715, %v2087
        %v2091 = vmul.f32 %v1720, %v2087
        %v2092 = vmul.f32 %v1725, %v2087
        %v2093 = vmul.f32 %v1730, %v2087
        %v2094 = vmul.f32 %v1735, %v2087
        %v2095 = vmul.f32 %v1740, %v2087
        %v2096 = vmul.f32 %v1745, %v2087
        %v2097 = vmul.f32 %v1750, %v2087
        %v2098 = vmul.f32 %v1755, %v2087
        %v2099 = vmul.f32 %v1760, %v2087
        %v2100 = vmul.f32 %v1765, %v2087
        %v2101 = vmul.f32 %v1770, %v2087
        %v2102 = vmul.f32 %v1775, %v2087
        %v2103 = vmul.f32 %v1780, %v2087
        %v2104 = vmul.f32 %v1785, %v2087
        %v2105 = vmul.f32 %v1790, %v2087
        %v2106 = vmul.f32 %v1795, %v2087
        %v2107 = vmul.f32 %v1800, %v2087
        %v2108 = vmul.f32 %v1805, %v2087
        %v2109 = vmul.f32 %v1810, %v2087
        %v2110 = vmul.f32 %v1815, %v2087
        %v2111 = vmul.f32 %v1820, %v2087
        %v2112 = vmul.f32 %v1825, %v2087
        %v2113 = vmul.f32 %v1830, %v2087
        %v2114 = vmul.f32 %v1835, %v2087
        %v2115 = vmul.f32 %v1840, %v2087
        %v2116 = vmul.f32 %v1845, %v2087
        %v2117 = vmul.f32 %v1850, %v2087
        %v2118 = vmul.f32 %v1855, %v2087
        %v2119 = vmul.f32 %v1860, %v2087
        %v2120 = vmul.f32 %v1865, %v2087
        %v2121 = vld [vmem:[#allocation5] sm:$0x1]
        %v2123 = vlaneseq
        %v2124 = vshrl.u32 %v2123, 7
        %v2125 = vsub.s32 0, %v2124
        %v2126 = vrot.slane %v2121, %v2125
        %v2128 = vadd.f32 %v2089, %v2126
        %v2129 = vadd.f32 %v2090, %v2126
        %v2130 = vadd.f32 %v2091, %v2126
        %v2131 = vadd.f32 %v2092, %v2126
        %v2132 = vadd.f32 %v2093, %v2126
        %v2133 = vadd.f32 %v2094, %v2126
        %v2134 = vadd.f32 %v2095, %v2126
        %v2135 = vadd.f32 %v2096, %v2126
        %v2136 = vadd.f32 %v2097, %v2126
        %v2137 = vadd.f32 %v2098, %v2126
        %v2138 = vadd.f32 %v2099, %v2126
        %v2139 = vadd.f32 %v2100, %v2126
        %v2140 = vadd.f32 %v2101, %v2126
        %v2141 = vadd.f32 %v2102, %v2126
        %v2142 = vadd.f32 %v2103, %v2126
        %v2143 = vadd.f32 %v2104, %v2126
        %v2144 = vadd.f32 %v2105, %v2126
        %v2145 = vadd.f32 %v2106, %v2126
        %v2146 = vadd.f32 %v2107, %v2126
        %v2147 = vadd.f32 %v2108, %v2126
        %v2148 = vadd.f32 %v2109, %v2126
        %v2149 = vadd.f32 %v2110, %v2126
        %v2150 = vadd.f32 %v2111, %v2126
        %v2151 = vadd.f32 %v2112, %v2126
        %v2152 = vadd.f32 %v2113, %v2126
        %v2153 = vadd.f32 %v2114, %v2126
        %v2154 = vadd.f32 %v2115, %v2126
        %v2155 = vadd.f32 %v2116, %v2126
        %v2156 = vadd.f32 %v2117, %v2126
        %v2157 = vadd.f32 %v2118, %v2126
        %v2158 = vadd.f32 %v2119, %v2126
        %v2159 = vadd.f32 %v2120, %v2126
        %v2160 = vmax.f32 %v2128, 0.0
        %v2161 = vmax.f32 %v2129, 0.0
        %v2162 = vmax.f32 %v2130, 0.0
        %v2163 = vmax.f32 %v2131, 0.0
        %v2164 = vmax.f32 %v2132, 0.0
        %v2165 = vmax.f32 %v2133, 0.0
        %v2166 = vmax.f32 %v2134, 0.0
        %v2167 = vmax.f32 %v2135, 0.0
        %v2168 = vmax.f32 %v2136, 0.0
        %v2169 = vmax.f32 %v2137, 0.0
        %v2170 = vmax.f32 %v2138, 0.0
        %v2171 = vmax.f32 %v2139, 0.0
        %v2172 = vmax.f32 %v2140, 0.0
        %v2173 = vmax.f32 %v2141, 0.0
        %v2174 = vmax.f32 %v2142, 0.0
        %v2175 = vmax.f32 %v2143, 0.0
        %v2176 = vmax.f32 %v2144, 0.0
        %v2177 = vmax.f32 %v2145, 0.0
        %v2178 = vmax.f32 %v2146, 0.0
        %v2179 = vmax.f32 %v2147, 0.0
        %v2180 = vmax.f32 %v2148, 0.0
        %v2181 = vmax.f32 %v2149, 0.0
        %v2182 = vmax.f32 %v2150, 0.0
        %v2183 = vmax.f32 %v2151, 0.0
        %v2184 = vmax.f32 %v2152, 0.0
        %v2185 = vmax.f32 %v2153, 0.0
        %v2186 = vmax.f32 %v2154, 0.0
        %v2187 = vmax.f32 %v2155, 0.0
        %v2188 = vmax.f32 %v2156, 0.0
        %v2189 = vmax.f32 %v2157, 0.0
        %v2190 = vmax.f32 %v2158, 0.0
        %v2191 = vmax.f32 %v2159, 0.0
        %2192 = vxpose.xlu0.b32.start [1/16] %v2160, 128
        %2193 = vxpose.xlu0.b32.cont [2/16] %v2161, 128
        %2194 = vxpose.xlu0.b32.cont [3/16] %v2162, 128
        %2195 = vxpose.xlu0.b32.cont [4/16] %v2163, 128
        %2196 = vxpose.xlu0.b32.cont [5/16] %v2164, 128
        %2197 = vxpose.xlu0.b32.cont [6/16] %v2165, 128
        %2198 = vxpose.xlu0.b32.cont [7/16] %v2166, 128
        %2199 = vxpose.xlu0.b32.cont [8/16] %v2167, 128
        %2200 = vxpose.xlu0.b32.cont [9/16] %v2168, 128
        %2201 = vxpose.xlu0.b32.cont [10/16] %v2169, 128
        %2202 = vxpose.xlu0.b32.cont [11/16] %v2170, 128
        %2203 = vxpose.xlu0.b32.cont [12/16] %v2171, 128
        %2204 = vxpose.xlu0.b32.cont [13/16] %v2172, 128
        %2205 = vxpose.xlu0.b32.cont [14/16] %v2173, 128
        %2206 = vxpose.xlu0.b32.cont [15/16] %v2174, 128
        %2207 = vxpose.xlu0.b32.end [16/16] %v2175, 128
        %v2208 = vpop.trf.xlu0
        %v2209 = vpop.trf.xlu0
        %v2210 = vpop.trf.xlu0
        %v2211 = vpop.trf.xlu0
        %v2212 = vpop.trf.xlu0
        %v2213 = vpop.trf.xlu0
        %v2214 = vpop.trf.xlu0
        %v2215 = vpop.trf.xlu0
        %v2216 = vpop.trf.xlu0
        %v2217 = vpop.trf.xlu0
        %v2218 = vpop.trf.xlu0
        %v2219 = vpop.trf.xlu0
        %v2220 = vpop.trf.xlu0
        %v2221 = vpop.trf.xlu0
        %v2222 = vpop.trf.xlu0
        %v2223 = vpop.trf.xlu0
        %2224 = vxpose.xlu0.b32.start [1/16] %v2176, 128
        %2225 = vxpose.xlu0.b32.cont [2/16] %v2177, 128
        %2226 = vxpose.xlu0.b32.cont [3/16] %v2178, 128
        %2227 = vxpose.xlu0.b32.cont [4/16] %v2179, 128
        %2228 = vxpose.xlu0.b32.cont [5/16] %v2180, 128
        %2229 = vxpose.xlu0.b32.cont [6/16] %v2181, 128
        %2230 = vxpose.xlu0.b32.cont [7/16] %v2182, 128
        %2231 = vxpose.xlu0.b32.cont [8/16] %v2183, 128
        %2232 = vxpose.xlu0.b32.cont [9/16] %v2184, 128
        %2233 = vxpose.xlu0.b32.cont [10/16] %v2185, 128
        %2234 = vxpose.xlu0.b32.cont [11/16] %v2186, 128
        %2235 = vxpose.xlu0.b32.cont [12/16] %v2187, 128
        %2236 = vxpose.xlu0.b32.cont [13/16] %v2188, 128
        %2237 = vxpose.xlu0.b32.cont [14/16] %v2189, 128
        %2238 = vxpose.xlu0.b32.cont [15/16] %v2190, 128
        %2239 = vxpose.xlu0.b32.end [16/16] %v2191, 128
        %v2240 = vpop.trf.xlu0
        %v2241 = vpop.trf.xlu0
        %v2242 = vpop.trf.xlu0
        %v2243 = vpop.trf.xlu0
        %v2244 = vpop.trf.xlu0
        %v2245 = vpop.trf.xlu0
        %v2246 = vpop.trf.xlu0
        %v2247 = vpop.trf.xlu0
        %v2248 = vpop.trf.xlu0
        %v2249 = vpop.trf.xlu0
        %v2250 = vpop.trf.xlu0
        %v2251 = vpop.trf.xlu0
        %v2252 = vpop.trf.xlu0
        %v2253 = vpop.trf.xlu0
        %v2254 = vpop.trf.xlu0
        %v2255 = vpop.trf.xlu0
        %2256 = vst [vmem:[%s213] sm:$0xff] %v2208
        %2257 = vst [vmem:[%s213 + $0x8] sm:$0xff] %v2240
      $region52: #{skeleton_block_forward.1} parent=35 // pred_fallthru
        _
      %s2258 = smul.u32 %s20, %s19
      %p2259 = scmp.lt.s32.totalorder %s2258, 1
      %s2260 = scalar_select %p2259, %s2258, 1
      %s2261 = smul.addr %s2260, 2
      %s2262 = smul.addr %s2261, 8
      %s2263 = scalar_lea.vmem %s4, %s2262
      // Predicated region
      $region53: #{skeleton_block_forward.1} parent=35 // pred_check
        %p2264 = pneg %p136
      $region54: #{skeleton_block_forward.1} parent=35 // pred_check_branch
        %2266 = sbr.rel (%p2264) target = $region56
      $region55: #{skeleton_block_forward.1} parent=35 // pred_region
        %s2267 = smul.u32 %s20, %s19
      $region56: #{skeleton_block_forward.1} parent=35 // pred_fallthru
        _
    $region36: #{skeleton_block_forward.1} parent=5 // pred_fallthru
      _
    %p2268 = scmp.le.s32.totalorder 2, %s10
    // Predicated region
    $region57: #{skeleton_block_forward.1} parent=5 // pred_check
      %p2269 = pneg %p2268
    $region58: #{skeleton_block_forward.1} parent=5 // pred_check_branch
      %2271 = sbr.rel (%p2269) target = $region60
    $region59: #{skeleton_block_forward.1} parent=5 // pred_region
      %s2272 = ssub.s32 %s10, 2
      // Predicated region
      $region61: #{skeleton_block_forward.1} parent=59 // pred_check
        %p2273 = pneg %p142
      $region62: #{skeleton_block_forward.1} parent=59 // pred_check_branch
        %2275 = sbr.rel (%p2273) target = $region64
      $region63: #{skeleton_block_forward.1} parent=59 // pred_region
        %s2276 = smul.u32 %s22, %s21
        %p2277 = scmp.lt.s32.totalorder %s2276, 1
        %s2278 = scalar_select %p2277, %s2276, 1
        %s2279 = smul.addr %s2278, 2
        %s2280 = smul.addr %s2279, 8
        %s2281 = scalar_lea.vmem %s4, %s2280
      $region64: #{skeleton_block_forward.1} parent=59 // pred_fallthru
        _
    $region60: #{skeleton_block_forward.1} parent=5 // pred_fallthru
      _
  $region6: #{skeleton_block_forward.1} parent=0 // loop_footer
    %s14 = sadd.s32 1, %s10
  $region7: #{skeleton_block_forward.1} parent=0 // loop_footer_branch
    %9 = sbr.rel target = $region3
  $region8: #{skeleton_block_forward.1} parent=0 // loop_exit
    _

</llo_original>
